<compile_context>
chip_gen: v7x
topology: tpu7x:2x2x1
jax: 0.10.0
libtpu: 0.0.40
codegen_flags: <defaults>
</compile_context>

<pallas_src>
import functools

import jax
import jax.numpy as jnp
from jax import lax
from jax.experimental import pallas as pl
from jax.experimental.pallas import tpu as pltpu


# TODO(synk): the HuggingFace tokenizer + pretrained LM encoder (get_feature) is
# untranslatable; deterministic random "features" are used as the LM output.


LANE = 128       # lane-dense padding target for the adjacency / node axis
ROW_BLOCK = 8    # pairwise row tile: bounds the live working set to ROW_BLOCK*M*D


def _round_up(x, m):
    return (x + m - 1) // m * m


def _proj_tile(rows):
    """Row tile for the shared projection; keep >=2 grid steps when possible."""
    for cand in (1024, 512, 256, 128):
        if rows % cand == 0 and rows // cand >= 2:
            return cand
    return rows


def _proj_kernel(f_ref, w1t_ref, b1_ref, x_ref):
    """x = f @ [W1a^T | W1b^T] + [b1 | 0]   — one fused MXU matmul per row tile."""
    x_ref[...] = (
        jnp.dot(f_ref[...], w1t_ref[...], preferred_element_type=jnp.float32)
        + b1_ref[...]
    )


def _pairwise_kernel(n_ref, xa_ref, xb_ref, w2_ref, a_ref, *, block_rows):
    """Per-example pairwise score + masked row softmax.

    n_ref  : SMEM (B,) int32  -- valid node count per example (scalar prefetch)
    xa_ref : VMEM (1, M, D)   -- f_i @ W1a^T + b1   (rows >= n are garbage; masked)
    xb_ref : VMEM (1, M, D)   -- f_j @ W1b^T
    w2_ref : VMEM (1, D)      -- second Linear weight (b2 dropped: shift-invariant)
    a_ref  : VMEM (1, M, M)   -- softmaxed adjacency, zero outside [:n, :n]
    """
    b = pl.program_id(0)
    n = n_ref[b]

    M = a_ref.shape[1]
    xb = xb_ref[0]                                   # (M, D)
    w2 = w2_ref[...].reshape(1, 1, -1)               # (1, 1, D)
    col_ids = lax.broadcasted_iota(jnp.int32, (block_rows, M), 1)
    col_valid = col_ids < n                          # shared by all row blocks

    # Rows >= n are all zeros: fill once, then only compute the valid row blocks.
    a_ref[...] = jnp.zeros_like(a_ref)

    num_valid_blocks = pl.cdiv(n, block_rows)

    @pl.loop(0, num_valid_blocks)
    def _(blk):
        i0 = pl.multiple_of(blk * block_rows, block_rows)
        xa_blk = xa_ref[0, pl.ds(i0, block_rows), :]                    # (Tr, D)
        # hidden[i, j, :] = relu(xa'[i] + xb[j])      (b1 already folded into xa')
        h = jnp.maximum(xa_blk[:, None, :] + xb[None, :, :], 0.0)       # (Tr, M, D)
        score = jnp.sum(h * w2, axis=-1)                                # (Tr, M)

        # masked softmax over columns (dim=1 of the adjacency)
        score = jnp.where(col_valid, score, -1e30)
        mrow = jnp.max(score, axis=-1, keepdims=True)
        e = jnp.exp(score - mrow)
        e = jnp.where(col_valid, e, 0.0)
        denom = jnp.sum(e, axis=-1, keepdims=True)
        denom = jnp.where(denom > 0.0, denom, 1.0)                      # n==0 guard
        inv = pl.reciprocal(denom, approx=True)
        inv = inv * (2.0 - denom * inv)          # one Newton step: approx -> ~f32

        row_ids = i0 + lax.broadcasted_iota(jnp.int32, (block_rows, M), 0)
        a_blk = jnp.where((row_ids < n) & col_valid, e * inv, 0.0)
        a_ref[0, pl.ds(i0, block_rows), :] = a_blk


@functools.partial(jax.jit, static_argnames=("max_node",))
def similarity_adjacency(num_nodes, features_padded, w1, b1, w2, b2, *, max_node):
    """features_padded: (B, max_node, dim) f32; num_nodes: (B,) int32.

    Returns the (B, max_node, max_node) row-softmaxed adjacency, zero outside
    [:n, :n].  b2 is accepted for API parity but unused (softmax shift-invariance).
    """
    del b2
    B, N0, D = features_padded.shape
    assert N0 == max_node
    M = _round_up(max_node, LANE)            # lane-dense adjacency, sublane-aligned rows
    feats = jnp.pad(features_padded, ((0, 0), (0, M - N0), (0, 0)))

    # Linear(2D, D): split columns acting on f_i / f_j, pre-transpose in the
    # wrapper (no in-kernel .T), fold b1 into the f_i half.
    w1t = jnp.concatenate([w1[:, :D].T, w1[:, D:].T], axis=1)            # (D, 2D)
    b1f = jnp.concatenate([b1, jnp.zeros_like(b1)]).reshape(1, 2 * D)    # (1, 2D)
    w2v = w2.reshape(1, D)

    # ---- pass 1: shared projection, hoisted out of the per-example loop ----
    R = B * M
    TR = _proj_tile(R)
    x = pl.pallas_call(
        _proj_kernel,
        out_shape=jax.ShapeDtypeStruct((R, 2 * D), jnp.float32),
        grid_spec=pltpu.PrefetchScalarGridSpec(
            num_scalar_prefetch=0,
            grid=(R // TR,),
            in_specs=[
                pl.BlockSpec((TR, D), lambda r: (r, 0)),
                pl.BlockSpec((D, 2 * D), lambda r: (0, 0)),
                pl.BlockSpec((1, 2 * D), lambda r: (0, 0)),
            ],
            out_specs=pl.BlockSpec((TR, 2 * D), lambda r: (r, 0)),
        ),
        compiler_params=pltpu.CompilerParams(dimension_semantics=("parallel",)),
    )(feats.reshape(R, D), w1t, b1f)
    x = x.reshape(B, M, 2 * D)
    xa = x[:, :, :D]     # f_i @ W1a^T + b1
    xb = x[:, :, D:]     # f_j @ W1b^T

    # ---- pass 2: pairwise relu/score + masked row softmax ------------------
    A_full = pl.pallas_call(
        functools.partial(_pairwise_kernel, block_rows=ROW_BLOCK),
        out_shape=jax.ShapeDtypeStruct((B, M, M), jnp.float32),
        grid_spec=pltpu.PrefetchScalarGridSpec(
            num_scalar_prefetch=1,
            grid=(B,),
            in_specs=[
                pl.BlockSpec((1, M, D), lambda b, n: (b, 0, 0)),
                pl.BlockSpec((1, M, D), lambda b, n: (b, 0, 0)),
                pl.BlockSpec((1, D), lambda b, n: (0, 0)),
            ],
            out_specs=pl.BlockSpec((1, M, M), lambda b, n: (b, 0, 0)),
        ),
        compiler_params=pltpu.CompilerParams(dimension_semantics=("parallel",)),
    )(num_nodes, xa, xb, w2v)

    return A_full[:, :max_node, :max_node]


def ref_similarity(num_nodes, features_padded, w1, b1, w2, b2, max_node):
    """Pure-JAX reference mirroring the PyTorch code (repeat/cat/Linear/softmax)."""
    hp = jax.lax.Precision.HIGHEST
    outs = []
    for bi in range(features_padded.shape[0]):
        n = int(num_nodes[bi])
        f = features_padded[bi, :n]
        a_feat = jnp.concatenate(
            [jnp.repeat(f, n, axis=0), jnp.tile(f, (n, 1))], axis=1)      # (n*n, 2d)
        h = jnp.maximum(jnp.dot(a_feat, w1.T, precision=hp) + b1, 0.0)
        s = (jnp.dot(h, w2.T, precision=hp) + b2).reshape(n, n)
        A = jax.nn.softmax(s, axis=1)
        outs.append(jnp.zeros((max_node, max_node), jnp.float32).at[:n, :n].set(A))
    return jnp.stack(outs)


def embed_model_forward(batch_features, batch_labels, batch_masks, params):
    """Python/JAX glue reproducing EmbedModel.forward padding semantics.

    batch_features: list of (N_b, dim) arrays (stand-in for get_feature output)
    Returns (feature, A, label, mask, num_nodes) like the PyTorch forward.
    """
    w1, b1, w2, b2 = params
    dim = batch_features[0].shape[1]
    max_node = max(f.shape[0] for f in batch_features)

    feats_padded = jnp.stack([
        jnp.concatenate(
            [f, jnp.zeros((max_node - f.shape[0], dim), jnp.float32)], axis=0)
        for f in batch_features
    ])                                                        # (B, max_node, dim)
    num_nodes = jnp.array([f.shape[0] for f in batch_features], jnp.int32)

    A = similarity_adjacency(num_nodes, feats_padded, w1, b1, w2, b2,
                             max_node=max_node)

    labels = jnp.array(
        [list(l) + [-10] * (max_node - len(l)) for l in batch_labels], jnp.float32)
    masks = jnp.array(
        [list(m) + [0] * (max_node - len(m)) for m in batch_masks], jnp.float32)
    return feats_padded, A, labels, masks, num_nodes


if __name__ == "__main__":
    dim = 128                    # lane-dense hidden-size stand-in (BERT would be 768)
    neighbor_counts = [8, 5]     # two examples, max_node = 8
    max_node = max(neighbor_counts)

    key = jax.random.PRNGKey(0)
    k_feat, k_w1, k_b1, k_w2, k_b2 = jax.random.split(key, 5)

    # Deterministic stand-in for the LM features of each example.
    feat_keys = jax.random.split(k_feat, len(neighbor_counts))
    batch_features = [
        jax.random.normal(fk, (n, dim), jnp.float32)
        for fk, n in zip(feat_keys, neighbor_counts)
    ]
    batch_labels = [[(i % 2) for i in range(n)] for n in neighbor_counts]
    batch_masks = [[1] * n for n in neighbor_counts]

    # similarity_network = Linear(2*dim, dim) -> ReLU -> Linear(dim, 1)
    w1 = jax.random.normal(k_w1, (dim, 2 * dim), jnp.float32) * 0.1
    b1 = jax.random.normal(k_b1, (dim,), jnp.float32) * 0.1
    w2 = jax.random.normal(k_w2, (1, dim), jnp.float32) * 0.1
    b2 = jax.random.normal(k_b2, (1,), jnp.float32) * 0.1
    params = (w1, b1, w2, b2)

    feature, A, label, mask, num_nodes = embed_model_forward(
        batch_features, batch_labels, batch_masks, params)
    A = jax.block_until_ready(A)

    # Sanity check against a pure-JAX reference of the PyTorch math.
    A_ref = ref_similarity(num_nodes, feature, w1, b1, w2, b2, max_node)
    assert A.shape == (len(neighbor_counts), max_node, max_node)
    assert feature.shape == (len(neighbor_counts), max_node, dim)
    assert label.shape == (len(neighbor_counts), max_node)
    assert mask.shape == (len(neighbor_counts), max_node)
    assert jnp.allclose(A, A_ref, atol=1e-3, rtol=1e-3), "mismatch vs reference"

    print("KERNEL_OK")
</pallas_src>

<mosaic_0001>
module attributes {stable_mosaic.version = 11 : i64} {
  func.func @_proj_kernel(%arg0: i32, %arg1: memref<128x128xf32, #tpu.memory_space<vmem>>, %arg2: memref<128x256xf32, #tpu.memory_space<vmem>>, %arg3: memref<1x256xf32, #tpu.memory_space<vmem>>, %arg4: memref<128x256xf32, #tpu.memory_space<vmem>>) attributes {dimension_semantics = [#tpu.dimension_semantics<parallel>], iteration_bounds = array<i64: 2>, scalar_prefetch = 0 : i64, scratch_operands = 0 : i64, tpu.core_type = #tpu.core_type<tc>, window_params = [{transform_indices = @transform_0, window_bounds = array<i64: 128, 128>}, {pipeline_mode = #tpu.pipeline_mode<synchronous>, transform_indices = @transform_1, window_bounds = array<i64: 128, 256>}, {pipeline_mode = #tpu.pipeline_mode<synchronous>, transform_indices = @transform_2, window_bounds = array<i64: 1, 256>}, {transform_indices = @transform_3, window_bounds = array<i64: 128, 256>}]} {
    %c0 = arith.constant 0 : index
    %c0_0 = arith.constant 0 : index
    %0 = vector.load %arg1[%c0, %c0_0] : memref<128x128xf32, #tpu.memory_space<vmem>>, vector<128x128xf32>
    %c0_1 = arith.constant 0 : index
    %c0_2 = arith.constant 0 : index
    %1 = vector.load %arg2[%c0_1, %c0_2] : memref<128x256xf32, #tpu.memory_space<vmem>>, vector<128x256xf32>
    %cst = arith.constant dense<0.000000e+00> : vector<128x256xf32>
    %2 = tpu.matmul %0, %1, %cst {dimension_numbers = #tpu.dot_dimension_numbers<[1], [0], [0], [1], [0, 0, 1, 1], [], []>} : vector<128x128xf32>, vector<128x256xf32>, vector<128x256xf32> -> vector<128x256xf32>
    %c0_3 = arith.constant 0 : index
    %c0_4 = arith.constant 0 : index
    %3 = vector.load %arg3[%c0_3, %c0_4] : memref<1x256xf32, #tpu.memory_space<vmem>>, vector<1x256xf32>
    %4 = vector.broadcast %3 : vector<1x256xf32> to vector<128x256xf32>
    %5 = arith.addf %2, %4 : vector<128x256xf32>
    %c0_5 = arith.constant 0 : index
    %c0_6 = arith.constant 0 : index
    %6 = vector.load %arg4[%c0_5, %c0_6] : memref<128x256xf32, #tpu.memory_space<vmem>>, vector<128x256xf32>
    tpu.vector_store %arg4[%c0_5, %c0_6], %5 {strides = array<i32>} : memref<128x256xf32, #tpu.memory_space<vmem>>, vector<128x256xf32>,
    return
  }
  func.func @transform_0(%arg0: i32) -> (i32, i32) {
    %c0_i32 = arith.constant 0 : i32
    %c0_i32_0 = arith.constant 0 : i32
    return %arg0, %c0_i32 : i32, i32
  }
  func.func @transform_1(%arg0: i32) -> (i32, i32) {
    %c0_i32 = arith.constant 0 : i32
    %c0_i32_0 = arith.constant 0 : i32
    %c0_i32_1 = arith.constant 0 : i32
    return %c0_i32, %c0_i32_0 : i32, i32
  }
  func.func @transform_2(%arg0: i32) -> (i32, i32) {
    %c0_i32 = arith.constant 0 : i32
    %c0_i32_0 = arith.constant 0 : i32
    %c0_i32_1 = arith.constant 0 : i32
    return %c0_i32, %c0_i32_0 : i32, i32
  }
  func.func @transform_3(%arg0: i32) -> (i32, i32) {
    %c0_i32 = arith.constant 0 : i32
    %c0_i32_0 = arith.constant 0 : i32
    return %arg0, %c0_i32 : i32, i32
  }
}

module attributes {stable_mosaic.version = 11 : i64} {
  func.func @_pairwise_kernel(%arg0: i32, %arg1: memref<2xi32, #tpu.memory_space<smem>>, %arg2: memref<1x128x128xf32, #tpu.memory_space<vmem>>, %arg3: memref<1x128x128xf32, #tpu.memory_space<vmem>>, %arg4: memref<1x128xf32, #tpu.memory_space<vmem>>, %arg5: memref<1x128x128xf32, #tpu.memory_space<vmem>>) attributes {dimension_semantics = [#tpu.dimension_semantics<parallel>], iteration_bounds = array<i64: 2>, scalar_prefetch = 1 : i64, scratch_operands = 0 : i64, tpu.core_type = #tpu.core_type<tc>, window_params = [{transform_indices = @transform_0, window_bounds = array<i64: 1, 128, 128>}, {transform_indices = @transform_1, window_bounds = array<i64: 1, 128, 128>}, {pipeline_mode = #tpu.pipeline_mode<synchronous>, transform_indices = @transform_2, window_bounds = array<i64: 1, 128>}, {transform_indices = @transform_3, window_bounds = array<i64: 1, 128, 128>}]} {
    %0 = arith.index_cast %arg0 : i32 to index
    %1 = memref.load %arg1[%0] : memref<2xi32, #tpu.memory_space<smem>>
    %c0 = arith.constant 0 : index
    %c0_0 = arith.constant 0 : index
    %c0_1 = arith.constant 0 : index
    %2 = vector.load %arg3[%c0, %c0_0, %c0_1] : memref<1x128x128xf32, #tpu.memory_space<vmem>>, vector<1x128x128xf32>
    %3 = vector.shape_cast %2 : vector<1x128x128xf32> to vector<128x128xf32>
    %c0_2 = arith.constant 0 : index
    %c0_3 = arith.constant 0 : index
    %4 = vector.load %arg4[%c0_2, %c0_3] : memref<1x128xf32, #tpu.memory_space<vmem>>, vector<1x128xf32>
    %5 = vector.shape_cast %4 : vector<1x128xf32> to vector<1x1x128xf32>
    %6 = tpu.iota {dimensions = array<i32: 1>} : vector<8x128xi32>
    %7 = vector.broadcast %1 : i32 to vector<8x128xi32>
    %8 = arith.cmpi slt, %6, %7 : vector<8x128xi32>
    %cst = arith.constant 0.000000e+00 : f32
    %9 = vector.broadcast %cst : f32 to vector<1x128x128xf32>
    %c0_4 = arith.constant 0 : index
    %c0_5 = arith.constant 0 : index
    %c0_6 = arith.constant 0 : index
    %10 = vector.load %arg5[%c0_4, %c0_5, %c0_6] : memref<1x128x128xf32, #tpu.memory_space<vmem>>, vector<1x128x128xf32>
    tpu.vector_store %arg5[%c0_4, %c0_5, %c0_6], %9 {strides = array<i32>} : memref<1x128x128xf32, #tpu.memory_space<vmem>>, vector<1x128x128xf32>,
    %c7_i32 = arith.constant 7 : i32
    %11 = arith.addi %1, %c7_i32 : i32
    %c8_i32 = arith.constant 8 : i32
    %12 = arith.divsi %11, %c8_i32 : i32
    %c0_i32 = arith.constant 0 : i32
    %13 = arith.subi %12, %c0_i32 : i32
    %c1_i32 = arith.constant 1 : i32
    %c1_i32_7 = arith.constant 1 : i32
    %14 = arith.subi %c1_i32, %c1_i32_7 : i32
    %15 = arith.addi %13, %14 : i32
    %c1_i32_8 = arith.constant 1 : i32
    %16 = arith.divsi %15, %c1_i32_8 : i32
    %c1_i32_9 = arith.constant 1 : i32
    %c0_i32_10 = arith.constant 0 : i32
    %c0_i32_11 = arith.constant 0 : i32
    %17 = arith.subi %16, %c0_i32_11 : i32
    %18 = arith.addi %c0_i32_11, %17 : i32
    %c1_i32_12 = arith.constant 1 : i32
    scf.for %arg6 = %c0_i32_11 to %18 step %c1_i32_12  : i32 {
      %19 = arith.muli %arg6, %c1_i32_9 : i32
      %20 = arith.addi %c0_i32_10, %19 : i32
      %c8_i32_13 = arith.constant 8 : i32
      %21 = arith.muli %20, %c8_i32_13 : i32
      %22 = tpu.assume_multiple %21, 8 : i32
      %c0_14 = arith.constant 0 : index
      %23 = arith.index_cast %22 : i32 to index
      %c0_15 = arith.constant 0 : index
      %24 = vector.load %arg2[%c0_14, %23, %c0_15] : memref<1x128x128xf32, #tpu.memory_space<vmem>>, vector<1x8x128xf32>
      %25 = vector.shape_cast %24 : vector<1x8x128xf32> to vector<8x128xf32>
      %26 = vector.shape_cast %25 : vector<8x128xf32> to vector<8x1x128xf32>
      %27 = vector.shape_cast %3 : vector<128x128xf32> to vector<1x128x128xf32>
      %28 = vector.broadcast %26 : vector<8x1x128xf32> to vector<8x128x128xf32>
      %29 = vector.broadcast %27 : vector<1x128x128xf32> to vector<8x128x128xf32>
      %30 = arith.addf %28, %29 : vector<8x128x128xf32>
      %cst_16 = arith.constant 0.000000e+00 : f32
      %31 = vector.broadcast %cst_16 : f32 to vector<8x128x128xf32>
      %32 = arith.maximumf %30, %31 : vector<8x128x128xf32>
      %33 = vector.broadcast %5 : vector<1x1x128xf32> to vector<8x128x128xf32>
      %34 = arith.mulf %32, %33 : vector<8x128x128xf32>
      %cst_17 = arith.constant dense<0.000000e+00> : vector<8x128xf32>
      %35 = vector.multi_reduction <add>, %34, %cst_17 [2] : vector<8x128x128xf32> to vector<8x128xf32>
      %cst_18 = arith.constant -1.000000e+30 : f32
      %36 = vector.broadcast %cst_18 : f32 to vector<8x128xf32>
      %37 = arith.select %8, %35, %36 : vector<8x128xi1>, vector<8x128xf32>
      %cst_19 = arith.constant dense<0xFF800000> : vector<8xf32>
      %38 = vector.multi_reduction <maximumf>, %37, %cst_19 [1] : vector<8x128xf32> to vector<8xf32>
      %39 = vector.shape_cast %38 : vector<8xf32> to vector<8x1xf32>
      %40 = vector.broadcast %39 : vector<8x1xf32> to vector<8x128xf32>
      %41 = arith.subf %37, %40 : vector<8x128xf32>
      %42 = math.exp %41 : vector<8x128xf32>
      %cst_20 = arith.constant 0.000000e+00 : f32
      %43 = vector.broadcast %cst_20 : f32 to vector<8x128xf32>
      %44 = arith.select %8, %42, %43 : vector<8x128xi1>, vector<8x128xf32>
      %cst_21 = arith.constant dense<0.000000e+00> : vector<8xf32>
      %45 = vector.multi_reduction <add>, %44, %cst_21 [1] : vector<8x128xf32> to vector<8xf32>
      %46 = vector.shape_cast %45 : vector<8xf32> to vector<8x1xf32>
      %cst_22 = arith.constant 0.000000e+00 : f32
      %47 = vector.broadcast %cst_22 : f32 to vector<8x1xf32>
      %48 = arith.cmpf ogt, %46, %47 : vector<8x1xf32>
      %cst_23 = arith.constant 1.000000e+00 : f32
      %49 = vector.broadcast %cst_23 : f32 to vector<8x1xf32>
      %50 = arith.select %48, %46, %49 : vector<8x1xi1>, vector<8x1xf32>
      %51 = tpu.reciprocal %50 {approx = true} : vector<8x1xf32> -> vector<8x1xf32>
      %52 = arith.mulf %50, %51 : vector<8x1xf32>
      %cst_24 = arith.constant 2.000000e+00 : f32
      %53 = vector.broadcast %cst_24 : f32 to vector<8x1xf32>
      %54 = arith.subf %53, %52 : vector<8x1xf32>
      %55 = arith.mulf %51, %54 : vector<8x1xf32>
      %56 = tpu.iota {dimensions = array<i32: 0>} : vector<8x128xi32>
      %57 = vector.broadcast %22 : i32 to vector<8x128xi32>
      %58 = arith.addi %57, %56 : vector<8x128xi32>
      %59 = vector.broadcast %1 : i32 to vector<8x128xi32>
      %60 = arith.cmpi slt, %58, %59 : vector<8x128xi32>
      %61 = arith.andi %60, %8 : vector<8x128xi1>
      %62 = vector.broadcast %55 : vector<8x1xf32> to vector<8x128xf32>
      %63 = arith.mulf %44, %62 : vector<8x128xf32>
      %cst_25 = arith.constant 0.000000e+00 : f32
      %64 = vector.broadcast %cst_25 : f32 to vector<8x128xf32>
      %65 = arith.select %61, %63, %64 : vector<8x128xi1>, vector<8x128xf32>
      %c0_26 = arith.constant 0 : index
      %66 = arith.index_cast %22 : i32 to index
      %c0_27 = arith.constant 0 : index
      %67 = vector.load %arg5[%c0_26, %66, %c0_27] : memref<1x128x128xf32, #tpu.memory_space<vmem>>, vector<1x8x128xf32>
      %68 = vector.shape_cast %67 : vector<1x8x128xf32> to vector<8x128xf32>
      %69 = vector.shape_cast %65 : vector<8x128xf32> to vector<1x8x128xf32>
      tpu.vector_store %arg5[%c0_26, %66, %c0_27], %69 {strides = array<i32>} : memref<1x128x128xf32, #tpu.memory_space<vmem>>, vector<1x8x128xf32>,
    }
    return
  }
  func.func @transform_0(%arg0: i32, %arg1: memref<2xi32, #tpu.memory_space<smem>>) -> (i32, i32, i32) {
    %c0_i32 = arith.constant 0 : i32
    %c0_i32_0 = arith.constant 0 : i32
    %c0_i32_1 = arith.constant 0 : i32
    return %arg0, %c0_i32, %c0_i32_0 : i32, i32, i32
  }
  func.func @transform_1(%arg0: i32, %arg1: memref<2xi32, #tpu.memory_space<smem>>) -> (i32, i32, i32) {
    %c0_i32 = arith.constant 0 : i32
    %c0_i32_0 = arith.constant 0 : i32
    %c0_i32_1 = arith.constant 0 : i32
    return %arg0, %c0_i32, %c0_i32_0 : i32, i32, i32
  }
  func.func @transform_2(%arg0: i32, %arg1: memref<2xi32, #tpu.memory_space<smem>>) -> (i32, i32) {
    %c0_i32 = arith.constant 0 : i32
    %c0_i32_0 = arith.constant 0 : i32
    %c0_i32_1 = arith.constant 0 : i32
    return %c0_i32, %c0_i32_0 : i32, i32
  }
  func.func @transform_3(%arg0: i32, %arg1: memref<2xi32, #tpu.memory_space<smem>>) -> (i32, i32, i32) {
    %c0_i32 = arith.constant 0 : i32
    %c0_i32_0 = arith.constant 0 : i32
    %c0_i32_1 = arith.constant 0 : i32
    return %arg0, %c0_i32, %c0_i32_0 : i32, i32, i32
  }
}

</mosaic_0001>

<llo_original>
// kernel: similarity_adjacency.2
$region0: #{similarity_adjacency.2}
  #allocation0 [shape = 'u32[]', space=smem, size = 0x4, offset = 0x4, fixed_abs, tag = 'smem constant byte address 0x4 - core index']
  #allocation1 [shape = 'u32[144,128]{1,0:T(1,128)}', space=vmem, size = 0x12000, scoped, tag = 'internal scratch']
  %s0 = inlined_call_operand.vmem [shape: f32[256,128], index: 0, kind: input, shape index: {}]
  %s1 = inlined_call_operand.vmem [shape: f32[128,256], index: 1, kind: input, shape index: {}]
  %s2 = inlined_call_operand.vmem [shape: f32[1,256], index: 2, kind: input, shape index: {}]
  %s3 = inlined_call_operand.vmem [shape: f32[256,256], index: 3, kind: output, shape index: {}]
  %s4 = sld [smem:[#allocation0]]
  $region45: #{similarity_adjacency.2} parent=0
    _
  %s6 = ssub.s32 1, %s4
  %s7 = scalar_select 0, %s6, %s4
  loop: start=0, step=1, limit=4
  $region2: #{similarity_adjacency.2} parent=0 // loop_pre_header
    _
  $region3: #{similarity_adjacency.2} parent=0 // loop_header
    %s9 = sphi 0, %s13
    %p10 = scmp.ge.s32.totalorder %s9, 4
    %s19 = sphi 0, %s21
    %s22 = sphi 0, %s19
    %s23 = sphi 0, %s22
    %s39 = sphi 0, %s23
    %s43 = sphi 0, %s43
    %s45 = sphi 0, %s43
    %s46 = sphi 0, %s45
    %s60 = sphi 0, %s46
    %s64 = sphi 0, %s64
    %s66 = sphi 0, %s64
    %s67 = sphi 0, %s66
    %s81 = sphi 0, %s67
    %s87 = sphi 0, %s89
    %s90 = sphi 0, %s87
    %s91 = sphi 0, %s90
    %s107 = sphi 0, %s91
  $region4: #{similarity_adjacency.2} parent=0 // loop_header_branch
    %12 = sbr.rel (%p10) target = $region8
  $region5: #{similarity_adjacency.2} parent=0 // loop_body
    %s14 = ssub.s32 %s9, 1
    %s15 = ssub.s32 %s9, 2
    %s16 = sadd.s32 %s9, 1
    %s17 = ssub.s32 %s9, %s16
    %p18 = scmp.eq.s32.totalorder %s17, 0
    %s20 = sadd.s32 %s19, 1
    %s21 = scalar_select %p18, %s19, %s20
    %p24 = pneg %p18
    %p25 = scmp.eq.s32.totalorder %s9, 1
    %p26 = por %p24, %p25
    %p27 = scmp.ne.s32.totalorder %s19, %s22
    %p28 = scmp.eq.s32.totalorder %s9, 0
    %p29 = por %p27, %p28
    %p30 = scmp.ne.s32.totalorder %s19, %s22
    %p31 = scmp.eq.s32.totalorder %s14, 1
    %p32 = por %p30, %p31
    %p33 = scmp.ne.s32.totalorder %s22, %s23
    %p34 = scmp.eq.s32.totalorder %s14, 0
    %p35 = por %p33, %p34
    %p36 = scmp.ne.s32.totalorder %s22, %s23
    %p37 = scmp.eq.s32.totalorder %s15, 1
    %p38 = por %p36, %p37
    %p40 = scmp.ne.s32.totalorder %s23, %s39
    %p41 = scmp.eq.s32.totalorder %s15, 0
    %p42 = por %p40, %p41
    %s44 = sadd.s32 %s43, 1
    %p47 = scmp.eq.s32.totalorder %s9, 1
    %p48 = scmp.ne.s32.totalorder %s43, %s45
    %p49 = scmp.eq.s32.totalorder %s9, 0
    %p50 = por %p48, %p49
    %p51 = scmp.ne.s32.totalorder %s43, %s45
    %p52 = scmp.eq.s32.totalorder %s14, 1
    %p53 = por %p51, %p52
    %p54 = scmp.ne.s32.totalorder %s45, %s46
    %p55 = scmp.eq.s32.totalorder %s14, 0
    %p56 = por %p54, %p55
    %p57 = scmp.ne.s32.totalorder %s45, %s46
    %p58 = scmp.eq.s32.totalorder %s15, 1
    %p59 = por %p57, %p58
    %p61 = scmp.ne.s32.totalorder %s46, %s60
    %p62 = scmp.eq.s32.totalorder %s15, 0
    %p63 = por %p61, %p62
    %s65 = sadd.s32 %s64, 1
    %p68 = scmp.eq.s32.totalorder %s9, 1
    %p69 = scmp.ne.s32.totalorder %s64, %s66
    %p70 = scmp.eq.s32.totalorder %s9, 0
    %p71 = por %p69, %p70
    %p72 = scmp.ne.s32.totalorder %s64, %s66
    %p73 = scmp.eq.s32.totalorder %s14, 1
    %p74 = por %p72, %p73
    %p75 = scmp.ne.s32.totalorder %s66, %s67
    %p76 = scmp.eq.s32.totalorder %s14, 0
    %p77 = por %p75, %p76
    %p78 = scmp.ne.s32.totalorder %s66, %s67
    %p79 = scmp.eq.s32.totalorder %s15, 1
    %p80 = por %p78, %p79
    %p82 = scmp.ne.s32.totalorder %s67, %s81
    %p83 = scmp.eq.s32.totalorder %s15, 0
    %p84 = por %p82, %p83
    %s85 = ssub.s32 %s9, %s16
    %p86 = scmp.eq.s32.totalorder %s85, 0
    %s88 = sadd.s32 %s87, 1
    %s89 = scalar_select %p86, %s87, %s88
    %p92 = pneg %p86
    %p93 = scmp.eq.s32.totalorder %s9, 1
    %p94 = por %p92, %p93
    %p95 = scmp.ne.s32.totalorder %s87, %s90
    %p96 = scmp.eq.s32.totalorder %s9, 0
    %p97 = por %p95, %p96
    %p98 = scmp.ne.s32.totalorder %s87, %s90
    %p99 = scmp.eq.s32.totalorder %s14, 1
    %p100 = por %p98, %p99
    %p101 = scmp.ne.s32.totalorder %s90, %s91
    %p102 = scmp.eq.s32.totalorder %s14, 0
    %p103 = por %p101, %p102
    %p104 = scmp.ne.s32.totalorder %s90, %s91
    %p105 = scmp.eq.s32.totalorder %s15, 1
    %p106 = por %p104, %p105
    %p108 = scmp.ne.s32.totalorder %s91, %s107
    %p109 = scmp.eq.s32.totalorder %s15, 0
    %p110 = por %p108, %p109
    %p111 = scmp.le.s32.totalorder 1, %s9
    %p112 = scmp.lt.s32.totalorder %s9, 3
    %p113 = pnand %p111, %p112
    %p114 = pneg %p113
    // Predicated region
    $region9: #{similarity_adjacency.2} parent=5 // pred_check
      _
    $region10: #{similarity_adjacency.2} parent=5 // pred_check_branch
      %116 = sbr.rel (%p113) target = $region12
    $region11: #{similarity_adjacency.2} parent=5 // pred_region
      %s117 = ssub.s32 %s9, 1
      // Predicated region
      $region13: #{similarity_adjacency.2} parent=11 // pred_check
        %p118 = pneg %p56
      $region14: #{similarity_adjacency.2} parent=11 // pred_check_branch
        %120 = sbr.rel (%p118) target = $region16
      $region15: #{similarity_adjacency.2} parent=11 // pred_region
        _
      $region16: #{similarity_adjacency.2} parent=11 // pred_fallthru
        _
      // Predicated region
      $region17: #{similarity_adjacency.2} parent=11 // pred_check
        %p121 = pneg %p77
      $region18: #{similarity_adjacency.2} parent=11 // pred_check_branch
        %123 = sbr.rel (%p121) target = $region20
      $region19: #{similarity_adjacency.2} parent=11 // pred_region
        _
      $region20: #{similarity_adjacency.2} parent=11 // pred_fallthru
        _
    $region12: #{similarity_adjacency.2} parent=5 // pred_fallthru
      _
    %p124 = scmp.lt.s32.totalorder %s9, 2
    // Predicated region
    $region21: #{similarity_adjacency.2} parent=5 // pred_check
      %p125 = pneg %p124
    $region22: #{similarity_adjacency.2} parent=5 // pred_check_branch
      %127 = sbr.rel (%p125) target = $region24
    $region23: #{similarity_adjacency.2} parent=5 // pred_region
      // Predicated region
      $region25: #{similarity_adjacency.2} parent=23 // pred_check
        %p128 = pneg %p29
      $region26: #{similarity_adjacency.2} parent=23 // pred_check_branch
        %130 = sbr.rel (%p128) target = $region28
      $region27: #{similarity_adjacency.2} parent=23 // pred_region
        %s131 = smul.u32 16, %s9
        %p132 = scmp.lt.s32.totalorder %s131, 31
        %s133 = scalar_select %p132, %s131, 31
        %s134 = smul.addr %s133, 8
        %s135 = scalar_lea.vmem %s0, %s134
        %s136 = smul.u32 16, %s9
      $region28: #{similarity_adjacency.2} parent=23 // pred_fallthru
        _
    $region24: #{similarity_adjacency.2} parent=5 // pred_fallthru
      _
    %p137 = scmp.le.s32.totalorder 1, %s9
    %p138 = scmp.lt.s32.totalorder %s9, 3
    %p139 = pnand %p137, %p138
    %p140 = pneg %p139
    // Predicated region
    $region29: #{similarity_adjacency.2} parent=5 // pred_check
      _
    $region30: #{similarity_adjacency.2} parent=5 // pred_check_branch
      %142 = sbr.rel (%p139) target = $region32
    $region31: #{similarity_adjacency.2} parent=5 // pred_region
      %s143 = ssub.s32 %s9, 1
      %s144 = smul.u32 16, %s14
      %p145 = scmp.lt.s32.totalorder %s144, 31
      %s146 = scalar_select %p145, %s144, 31
      %s147 = smul.addr %s146, 8
      %s148 = scalar_lea.vmem %s0, %s147
      %p149 = pneg %p35
      %p150 = pneg %p32
      %p151 = pneg %p56
      %p152 = pneg %p53
      %p153 = pneg %p77
      %p154 = pneg %p74
      %p155 = pneg %p103
      %p156 = pneg %p100
      %s157 = smul.u32 16, %s14
      %p158 = scmp.lt.s32.totalorder %s157, 31
      %s159 = scalar_select %p158, %s157, 31
      %s160 = smul.addr %s159, 2
      %s161 = smul.addr %s160, 8
      %s162 = scalar_lea.vmem %s3, %s161
      %s163 = smul.u32 16, %s14
      %p164 = scmp.lt.s32.totalorder %s163, 31
      %s165 = scalar_select %p164, %s163, 31
      %s166 = smul.addr %s165, 8
      %s167 = scalar_lea.vmem %s0, %s166
      %s168 = smul.u32 16, %s14
      %s169 = smul.u32 16, %s14
      %p170 = scmp.lt.s32.totalorder %s169, 31
      %s171 = scalar_select %p170, %s169, 31
      %s172 = smul.addr %s171, 2
      %s173 = smul.addr %s172, 8
      %s174 = scalar_lea.vmem %s3, %s173
      %s175 = smul.u32 16, %s14
      %v176 = vld [vmem:[%s167] sm:$0xff]
      %v177 = vld [vmem:[%s167 + $0x8] sm:$0xff]
      %v178 = vld [vmem:[%s167 + $0x10] sm:$0xff]
      %v179 = vld [vmem:[%s167 + $0x18] sm:$0xff]
      %v180 = vld [vmem:[%s167 + $0x20] sm:$0xff]
      %v181 = vld [vmem:[%s167 + $0x28] sm:$0xff]
      %v182 = vld [vmem:[%s167 + $0x30] sm:$0xff]
      %v183 = vld [vmem:[%s167 + $0x38] sm:$0xff]
      %v184 = vld [vmem:[%s167 + $0x40] sm:$0xff]
      %v185 = vld [vmem:[%s167 + $0x48] sm:$0xff]
      %v186 = vld [vmem:[%s167 + $0x50] sm:$0xff]
      %v187 = vld [vmem:[%s167 + $0x58] sm:$0xff]
      %v188 = vld [vmem:[%s167 + $0x60] sm:$0xff]
      %v189 = vld [vmem:[%s167 + $0x68] sm:$0xff]
      %v190 = vld [vmem:[%s167 + $0x70] sm:$0xff]
      %v191 = vld [vmem:[%s167 + $0x78] sm:$0xff]
      %v192 = vld [vmem:[%s1] sm:$0xff]
      %v193 = vld [vmem:[%s1 + $0x8] sm:$0xff]
      %v194 = vld [vmem:[%s1 + $0x10] sm:$0xff]
      %v195 = vld [vmem:[%s1 + $0x18] sm:$0xff]
      %v196 = vld [vmem:[%s1 + $0x20] sm:$0xff]
      %v197 = vld [vmem:[%s1 + $0x28] sm:$0xff]
      %v198 = vld [vmem:[%s1 + $0x30] sm:$0xff]
      %v199 = vld [vmem:[%s1 + $0x38] sm:$0xff]
      %v200 = vld [vmem:[%s1 + $0x40] sm:$0xff]
      %v201 = vld [vmem:[%s1 + $0x48] sm:$0xff]
      %v202 = vld [vmem:[%s1 + $0x50] sm:$0xff]
      %v203 = vld [vmem:[%s1 + $0x58] sm:$0xff]
      %v204 = vld [vmem:[%s1 + $0x60] sm:$0xff]
      %v205 = vld [vmem:[%s1 + $0x68] sm:$0xff]
      %v206 = vld [vmem:[%s1 + $0x70] sm:$0xff]
      %v207 = vld [vmem:[%s1 + $0x78] sm:$0xff]
      %v208 = vld [vmem:[%s1 + $0x80] sm:$0xff]
      %v209 = vld [vmem:[%s1 + $0x88] sm:$0xff]
      %v210 = vld [vmem:[%s1 + $0x90] sm:$0xff]
      %v211 = vld [vmem:[%s1 + $0x98] sm:$0xff]
      %v212 = vld [vmem:[%s1 + $0xa0] sm:$0xff]
      %v213 = vld [vmem:[%s1 + $0xa8] sm:$0xff]
      %v214 = vld [vmem:[%s1 + $0xb0] sm:$0xff]
      %v215 = vld [vmem:[%s1 + $0xb8] sm:$0xff]
      %v216 = vld [vmem:[%s1 + $0xc0] sm:$0xff]
      %v217 = vld [vmem:[%s1 + $0xc8] sm:$0xff]
      %v218 = vld [vmem:[%s1 + $0xd0] sm:$0xff]
      %v219 = vld [vmem:[%s1 + $0xd8] sm:$0xff]
      %v220 = vld [vmem:[%s1 + $0xe0] sm:$0xff]
      %v221 = vld [vmem:[%s1 + $0xe8] sm:$0xff]
      %v222 = vld [vmem:[%s1 + $0xf0] sm:$0xff]
      %v223 = vld [vmem:[%s1 + $0xf8] sm:$0xff]
      %v224 = vld [vmem:[%s2] sm:$0x3]
      %v226 = vlaneseq
      %v227 = vshrl.u32 %v226, 7
      %v228 = vsub.s32 0, %v227
      %v229 = vrot.slane %v224, %v228
      %v230 = vlaneseq
      %v231 = vshrl.u32 %v230, 7
      %v232 = vsub.s32 1, %v231
      %v233 = vrot.slane %v224, %v232
      %236 = vmatprep.subr.mxu0 %v193
      %237 = vmatpush1.msra.mxu0 %v192
      %238 = vmatprep.subr.mxu0 %v195
      %239 = vmatpush1.msra.mxu0 %v194
      %240 = vmatprep.subr.mxu0 %v197
      %241 = vmatpush1.msra.mxu0 %v196
      %242 = vmatprep.subr.mxu0 %v199
      %243 = vmatpush1.msra.mxu0 %v198
      %244 = vmatprep.subr.mxu0 %v201
      %245 = vmatpush1.msra.mxu0 %v200
      %246 = vmatprep.subr.mxu0 %v203
      %247 = vmatpush1.msra.mxu0 %v202
      %248 = vmatprep.subr.mxu0 %v205
      %249 = vmatpush1.msra.mxu0 %v204
      %250 = vmatprep.subr.mxu0 %v207
      %251 = vmatpush1.msra.mxu0 %v206
      %252 = vmatprep.subr.mxu0 %v209
      %253 = vmatpush1.msra.mxu0 %v208
      %254 = vmatprep.subr.mxu0 %v211
      %255 = vmatpush1.msra.mxu0 %v210
      %256 = vmatprep.subr.mxu0 %v213
      %257 = vmatpush1.msra.mxu0 %v212
      %258 = vmatprep.subr.mxu0 %v215
      %259 = vmatpush1.msra.mxu0 %v214
      %260 = vmatprep.subr.mxu0 %v217
      %261 = vmatpush1.msra.mxu0 %v216
      %262 = vmatprep.subr.mxu0 %v219
      %263 = vmatpush1.msra.mxu0 %v218
      %264 = vmatprep.subr.mxu0 %v221
      %265 = vmatpush1.msra.mxu0 %v220
      %266 = vmatprep.subr.mxu0 %v223
      %267 = vmatpush1.msra.mxu0 %v222
      %268 = vmatprep.subr.mxu0 0.0
      %269 = vmatpush1.msra.mxu0 0.0
      %270 = vmatprep.subr.mxu0 0.0
      %271 = vmatpush1.msra.mxu0 0.0
      %272 = vmatprep.subr.mxu0 0.0
      %273 = vmatpush1.msra.mxu0 0.0
      %274 = vmatprep.subr.mxu0 0.0
      %275 = vmatpush1.msra.mxu0 0.0
      %276 = vmatprep.subr.mxu0 0.0
      %277 = vmatpush1.msra.mxu0 0.0
      %278 = vmatprep.subr.mxu0 0.0
      %279 = vmatpush1.msra.mxu0 0.0
      %280 = vmatprep.subr.mxu0 0.0
      %281 = vmatpush1.msra.mxu0 0.0
      %282 = vmatprep.subr.mxu0 0.0
      %283 = vmatpush1.msra.mxu0 0.0
      %284 = vmatprep.subr.mxu0 0.0
      %285 = vmatpush1.msra.mxu0 0.0
      %286 = vmatprep.subr.mxu0 0.0
      %287 = vmatpush1.msra.mxu0 0.0
      %288 = vmatprep.subr.mxu0 0.0
      %289 = vmatpush1.msra.mxu0 0.0
      %290 = vmatprep.subr.mxu0 0.0
      %291 = vmatpush1.msra.mxu0 0.0
      %292 = vmatprep.subr.mxu0 0.0
      %293 = vmatpush1.msra.mxu0 0.0
      %294 = vmatprep.subr.mxu0 0.0
      %295 = vmatpush1.msra.mxu0 0.0
      %296 = vmatprep.subr.mxu0 0.0
      %297 = vmatpush1.msra.mxu0 0.0
      %298 = vmatprep.subr.mxu0 0.0
      %299 = vmatpush1.msra.mxu0 0.0
      %300 = vmatprep.mubr.f32.mxu0 0.0
      %301 = vmatmul.mubr.f32.gmra.mrb[0].mxu0 %v176
      %v302 = vpop.f32.mrb[0].mxu0
      %v303 = vadd.f32 %v229, %v302
      %v304 = vpop.f32.mrb[0].mxu0
      %v305 = vadd.f32 %v233, %v304
      %306 = vmatprep.mubr.f32.mxu0 0.0
      %307 = vmatmul.mubr.f32.gmra.mrb[0].mxu0 %v177
      %v308 = vpop.f32.mrb[0].mxu0
      %v309 = vadd.f32 %v229, %v308
      %v310 = vpop.f32.mrb[0].mxu0
      %v311 = vadd.f32 %v233, %v310
      %312 = vmatprep.mubr.f32.mxu0 0.0
      %313 = vmatmul.mubr.f32.gmra.mrb[0].mxu0 %v178
      %v314 = vpop.f32.mrb[0].mxu0
      %v315 = vadd.f32 %v229, %v314
      %v316 = vpop.f32.mrb[0].mxu0
      %v317 = vadd.f32 %v233, %v316
      %318 = vmatprep.mubr.f32.mxu0 0.0
      %319 = vmatmul.mubr.f32.gmra.mrb[0].mxu0 %v179
      %v320 = vpop.f32.mrb[0].mxu0
      %v321 = vadd.f32 %v229, %v320
      %v322 = vpop.f32.mrb[0].mxu0
      %v323 = vadd.f32 %v233, %v322
      %324 = vmatprep.mubr.f32.mxu0 0.0
      %325 = vmatmul.mubr.f32.gmra.mrb[0].mxu0 %v180
      %v326 = vpop.f32.mrb[0].mxu0
      %v327 = vadd.f32 %v229, %v326
      %v328 = vpop.f32.mrb[0].mxu0
      %v329 = vadd.f32 %v233, %v328
      %330 = vmatprep.mubr.f32.mxu0 0.0
      %331 = vmatmul.mubr.f32.gmra.mrb[0].mxu0 %v181
      %v332 = vpop.f32.mrb[0].mxu0
      %v333 = vadd.f32 %v229, %v332
      %v334 = vpop.f32.mrb[0].mxu0
      %v335 = vadd.f32 %v233, %v334
      %336 = vmatprep.mubr.f32.mxu0 0.0
      %337 = vmatmul.mubr.f32.gmra.mrb[0].mxu0 %v182
      %v338 = vpop.f32.mrb[0].mxu0
      %v339 = vadd.f32 %v229, %v338
      %v340 = vpop.f32.mrb[0].mxu0
      %v341 = vadd.f32 %v233, %v340
      %342 = vmatprep.mubr.f32.mxu0 0.0
      %343 = vmatmul.mubr.f32.gmra.mrb[0].mxu0 %v183
      %v344 = vpop.f32.mrb[0].mxu0
      %v345 = vadd.f32 %v229, %v344
      %v346 = vpop.f32.mrb[0].mxu0
      %v347 = vadd.f32 %v233, %v346
      %348 = vmatprep.mubr.f32.mxu0 0.0
      %349 = vmatmul.mubr.f32.gmra.mrb[0].mxu0 %v184
      %v350 = vpop.f32.mrb[0].mxu0
      %v351 = vadd.f32 %v229, %v350
      %v352 = vpop.f32.mrb[0].mxu0
      %v353 = vadd.f32 %v233, %v352
      %354 = vmatprep.mubr.f32.mxu0 0.0
      %355 = vmatmul.mubr.f32.gmra.mrb[0].mxu0 %v185
      %v356 = vpop.f32.mrb[0].mxu0
      %v357 = vadd.f32 %v229, %v356
      %v358 = vpop.f32.mrb[0].mxu0
      %v359 = vadd.f32 %v233, %v358
      %360 = vmatprep.mubr.f32.mxu0 0.0
      %361 = vmatmul.mubr.f32.gmra.mrb[0].mxu0 %v186
      %v362 = vpop.f32.mrb[0].mxu0
      %v363 = vadd.f32 %v229, %v362
      %v364 = vpop.f32.mrb[0].mxu0
      %v365 = vadd.f32 %v233, %v364
      %366 = vmatprep.mubr.f32.mxu0 0.0
      %367 = vmatmul.mubr.f32.gmra.mrb[0].mxu0 %v187
      %v368 = vpop.f32.mrb[0].mxu0
      %v369 = vadd.f32 %v229, %v368
      %v370 = vpop.f32.mrb[0].mxu0
      %v371 = vadd.f32 %v233, %v370
      %372 = vmatprep.mubr.f32.mxu0 0.0
      %373 = vmatmul.mubr.f32.gmra.mrb[0].mxu0 %v188
      %v374 = vpop.f32.mrb[0].mxu0
      %v375 = vadd.f32 %v229, %v374
      %v376 = vpop.f32.mrb[0].mxu0
      %v377 = vadd.f32 %v233, %v376
      %378 = vmatprep.mubr.f32.mxu0 0.0
      %379 = vmatmul.mubr.f32.gmra.mrb[0].mxu0 %v189
      %v380 = vpop.f32.mrb[0].mxu0
      %v381 = vadd.f32 %v229, %v380
      %v382 = vpop.f32.mrb[0].mxu0
      %v383 = vadd.f32 %v233, %v382
      %384 = vmatprep.mubr.f32.mxu0 0.0
      %385 = vmatmul.mubr.f32.gmra.mrb[0].mxu0 %v190
      %v386 = vpop.f32.mrb[0].mxu0
      %v387 = vadd.f32 %v229, %v386
      %v388 = vpop.f32.mrb[0].mxu0
      %v389 = vadd.f32 %v233, %v388
      %390 = vmatprep.mubr.f32.mxu0 0.0
      %391 = vmatmul.mubr.f32.gmra.mrb[0].mxu0 %v191
      %v392 = vpop.f32.mrb[0].mxu0
      %v393 = vadd.f32 %v229, %v392
      %v394 = vpop.f32.mrb[0].mxu0
      %v395 = vadd.f32 %v233, %v394
      %396 = vdwg.mxu0
      %397 = vst [vmem:[%s174] sm:$0xff] %v303
      %398 = vst [vmem:[%s174 + $0x8] sm:$0xff] %v305
      %399 = vst [vmem:[%s174 + $0x10] sm:$0xff] %v309
      %400 = vst [vmem:[%s174 + $0x18] sm:$0xff] %v311
      %401 = vst [vmem:[%s174 + $0x20] sm:$0xff] %v315
      %402 = vst [vmem:[%s174 + $0x28] sm:$0xff] %v317
      %403 = vst [vmem:[%s174 + $0x30] sm:$0xff] %v321
      %404 = vst [vmem:[%s174 + $0x38] sm:$0xff] %v323
      %405 = vst [vmem:[%s174 + $0x40] sm:$0xff] %v327
      %406 = vst [vmem:[%s174 + $0x48] sm:$0xff] %v329
      %407 = vst [vmem:[%s174 + $0x50] sm:$0xff] %v333
      %408 = vst [vmem:[%s174 + $0x58] sm:$0xff] %v335
      %409 = vst [vmem:[%s174 + $0x60] sm:$0xff] %v339
      %410 = vst [vmem:[%s174 + $0x68] sm:$0xff] %v341
      %411 = vst [vmem:[%s174 + $0x70] sm:$0xff] %v345
      %412 = vst [vmem:[%s174 + $0x78] sm:$0xff] %v347
      %413 = vst [vmem:[%s174 + $0x80] sm:$0xff] %v351
      %414 = vst [vmem:[%s174 + $0x88] sm:$0xff] %v353
      %415 = vst [vmem:[%s174 + $0x90] sm:$0xff] %v357
      %416 = vst [vmem:[%s174 + $0x98] sm:$0xff] %v359
      %417 = vst [vmem:[%s174 + $0xa0] sm:$0xff] %v363
      %418 = vst [vmem:[%s174 + $0xa8] sm:$0xff] %v365
      %419 = vst [vmem:[%s174 + $0xb0] sm:$0xff] %v369
      %420 = vst [vmem:[%s174 + $0xb8] sm:$0xff] %v371
      %421 = vst [vmem:[%s174 + $0xc0] sm:$0xff] %v375
      %422 = vst [vmem:[%s174 + $0xc8] sm:$0xff] %v377
      %423 = vst [vmem:[%s174 + $0xd0] sm:$0xff] %v381
      %424 = vst [vmem:[%s174 + $0xd8] sm:$0xff] %v383
      %425 = vst [vmem:[%s174 + $0xe0] sm:$0xff] %v387
      %426 = vst [vmem:[%s174 + $0xe8] sm:$0xff] %v389
      %427 = vst [vmem:[%s174 + $0xf0] sm:$0xff] %v393
      %428 = vst [vmem:[%s174 + $0xf8] sm:$0xff] %v395
      %s429 = smul.u32 16, %s14
      %p430 = scmp.lt.s32.totalorder %s429, 31
      %s431 = scalar_select %p430, %s429, 31
      %s432 = smul.addr %s431, 2
      %s433 = smul.addr %s432, 8
      %s434 = scalar_lea.vmem %s3, %s433
      // Predicated region
      $region33: #{similarity_adjacency.2} parent=31 // pred_check
        %p435 = pneg %p100
      $region34: #{similarity_adjacency.2} parent=31 // pred_check_branch
        %437 = sbr.rel (%p435) target = $region36
      $region35: #{similarity_adjacency.2} parent=31 // pred_region
        %s438 = smul.u32 16, %s14
      $region36: #{similarity_adjacency.2} parent=31 // pred_fallthru
        _
    $region32: #{similarity_adjacency.2} parent=5 // pred_fallthru
      _
    %p439 = scmp.le.s32.totalorder 2, %s9
    // Predicated region
    $region37: #{similarity_adjacency.2} parent=5 // pred_check
      %p440 = pneg %p439
    $region38: #{similarity_adjacency.2} parent=5 // pred_check_branch
      %442 = sbr.rel (%p440) target = $region40
    $region39: #{similarity_adjacency.2} parent=5 // pred_region
      %s443 = ssub.s32 %s9, 2
      // Predicated region
      $region41: #{similarity_adjacency.2} parent=39 // pred_check
        %p444 = pneg %p106
      $region42: #{similarity_adjacency.2} parent=39 // pred_check_branch
        %446 = sbr.rel (%p444) target = $region44
      $region43: #{similarity_adjacency.2} parent=39 // pred_region
        %s447 = smul.u32 16, %s15
        %p448 = scmp.lt.s32.totalorder %s447, 31
        %s449 = scalar_select %p448, %s447, 31
        %s450 = smul.addr %s449, 2
        %s451 = smul.addr %s450, 8
        %s452 = scalar_lea.vmem %s3, %s451
      $region44: #{similarity_adjacency.2} parent=39 // pred_fallthru
        _
    $region40: #{similarity_adjacency.2} parent=5 // pred_fallthru
      _
  $region6: #{similarity_adjacency.2} parent=0 // loop_footer
    %s13 = sadd.s32 1, %s9
  $region7: #{similarity_adjacency.2} parent=0 // loop_footer_branch
    %8 = sbr.rel target = $region3
  $region8: #{similarity_adjacency.2} parent=0 // loop_exit
    _

// kernel: similarity_adjacency.3
$region0: #{similarity_adjacency.3}
  #allocation0 [shape = 'u32[]', space=smem, size = 0x4, offset = 0x4, fixed_abs, tag = 'smem constant byte address 0x4 - core index']
  #allocation1 [shape = 'u32[144,128]{1,0:T(1,128)}', space=vmem, size = 0x12000, scoped, tag = 'internal scratch']
  #allocation2 [shape = 's32[1]{0}', space=sflag, size = 0x4, scoped, tag = 'scoped memory for similarity_adjacency.3']
  #allocation3 [shape = 'u8[512]{0}', space=smem, size = 0x200, scoped, tag = 'prefetched SMEM operand 0']
  %s0 = inlined_call_operand.vmem [shape: s32[2], index: 0, kind: input, shape index: {}]
  %s1 = inlined_call_operand.vmem [shape: f32[2,128,128], index: 1, kind: input, shape index: {}]
  %s2 = inlined_call_operand.vmem [shape: f32[2,128,128], index: 2, kind: input, shape index: {}]
  %s3 = inlined_call_operand.vmem [shape: f32[1,128], index: 3, kind: input, shape index: {}]
  %s4 = inlined_call_operand.vmem [shape: f32[2,128,128], index: 4, kind: output, shape index: {}]
  %s5 = sld [smem:[#allocation0]]
  $region52: #{similarity_adjacency.3} parent=0
    _
  %s7 = ssub.s32 1, %s5
  %s8 = scalar_select 0, %s7, %s5
  %s9 = sshll.u32 %s0, 4
  %s10 = int_to_ptr.vmem [resolvable:$true] %s9
  %12 = dma.vmem_to_smem %s10, 16, [#allocation3], [#allocation2]
  %13 = dma.done [#allocation2], 16
  %14 = sfence
  loop: start=0, step=1, limit=4
  $region2: #{similarity_adjacency.3} parent=0 // loop_pre_header
    _
  $region3: #{similarity_adjacency.3} parent=0 // loop_header
    %s16 = sphi 0, %s20
    %p17 = scmp.ge.s32.totalorder %s16, 4
    %s26 = sphi 0, %s28
    %s29 = sphi 0, %s26
    %s30 = sphi 0, %s29
    %s46 = sphi 0, %s30
    %s52 = sphi 0, %s54
    %s55 = sphi 0, %s52
    %s56 = sphi 0, %s55
    %s72 = sphi 0, %s56
    %s76 = sphi 0, %s76
    %s78 = sphi 0, %s76
    %s79 = sphi 0, %s78
    %s93 = sphi 0, %s79
    %s99 = sphi 0, %s101
    %s102 = sphi 0, %s99
    %s103 = sphi 0, %s102
    %s119 = sphi 0, %s103
  $region4: #{similarity_adjacency.3} parent=0 // loop_header_branch
    %19 = sbr.rel (%p17) target = $region8
  $region5: #{similarity_adjacency.3} parent=0 // loop_body
    %s21 = ssub.s32 %s16, 1
    %s22 = ssub.s32 %s16, 2
    %s23 = sadd.s32 %s16, 1
    %s24 = ssub.s32 %s16, %s23
    %p25 = scmp.eq.s32.totalorder %s24, 0
    %s27 = sadd.s32 %s26, 1
    %s28 = scalar_select %p25, %s26, %s27
    %p31 = pneg %p25
    %p32 = scmp.eq.s32.totalorder %s16, 1
    %p33 = por %p31, %p32
    %p34 = scmp.ne.s32.totalorder %s26, %s29
    %p35 = scmp.eq.s32.totalorder %s16, 0
    %p36 = por %p34, %p35
    %p37 = scmp.ne.s32.totalorder %s26, %s29
    %p38 = scmp.eq.s32.totalorder %s21, 1
    %p39 = por %p37, %p38
    %p40 = scmp.ne.s32.totalorder %s29, %s30
    %p41 = scmp.eq.s32.totalorder %s21, 0
    %p42 = por %p40, %p41
    %p43 = scmp.ne.s32.totalorder %s29, %s30
    %p44 = scmp.eq.s32.totalorder %s22, 1
    %p45 = por %p43, %p44
    %p47 = scmp.ne.s32.totalorder %s30, %s46
    %p48 = scmp.eq.s32.totalorder %s22, 0
    %p49 = por %p47, %p48
    %s50 = ssub.s32 %s16, %s23
    %p51 = scmp.eq.s32.totalorder %s50, 0
    %s53 = sadd.s32 %s52, 1
    %s54 = scalar_select %p51, %s52, %s53
    %p57 = pneg %p51
    %p58 = scmp.eq.s32.totalorder %s16, 1
    %p59 = por %p57, %p58
    %p60 = scmp.ne.s32.totalorder %s52, %s55
    %p61 = scmp.eq.s32.totalorder %s16, 0
    %p62 = por %p60, %p61
    %p63 = scmp.ne.s32.totalorder %s52, %s55
    %p64 = scmp.eq.s32.totalorder %s21, 1
    %p65 = por %p63, %p64
    %p66 = scmp.ne.s32.totalorder %s55, %s56
    %p67 = scmp.eq.s32.totalorder %s21, 0
    %p68 = por %p66, %p67
    %p69 = scmp.ne.s32.totalorder %s55, %s56
    %p70 = scmp.eq.s32.totalorder %s22, 1
    %p71 = por %p69, %p70
    %p73 = scmp.ne.s32.totalorder %s56, %s72
    %p74 = scmp.eq.s32.totalorder %s22, 0
    %p75 = por %p73, %p74
    %s77 = sadd.s32 %s76, 1
    %p80 = scmp.eq.s32.totalorder %s16, 1
    %p81 = scmp.ne.s32.totalorder %s76, %s78
    %p82 = scmp.eq.s32.totalorder %s16, 0
    %p83 = por %p81, %p82
    %p84 = scmp.ne.s32.totalorder %s76, %s78
    %p85 = scmp.eq.s32.totalorder %s21, 1
    %p86 = por %p84, %p85
    %p87 = scmp.ne.s32.totalorder %s78, %s79
    %p88 = scmp.eq.s32.totalorder %s21, 0
    %p89 = por %p87, %p88
    %p90 = scmp.ne.s32.totalorder %s78, %s79
    %p91 = scmp.eq.s32.totalorder %s22, 1
    %p92 = por %p90, %p91
    %p94 = scmp.ne.s32.totalorder %s79, %s93
    %p95 = scmp.eq.s32.totalorder %s22, 0
    %p96 = por %p94, %p95
    %s97 = ssub.s32 %s16, %s23
    %p98 = scmp.eq.s32.totalorder %s97, 0
    %s100 = sadd.s32 %s99, 1
    %s101 = scalar_select %p98, %s99, %s100
    %p104 = pneg %p98
    %p105 = scmp.eq.s32.totalorder %s16, 1
    %p106 = por %p104, %p105
    %p107 = scmp.ne.s32.totalorder %s99, %s102
    %p108 = scmp.eq.s32.totalorder %s16, 0
    %p109 = por %p107, %p108
    %p110 = scmp.ne.s32.totalorder %s99, %s102
    %p111 = scmp.eq.s32.totalorder %s21, 1
    %p112 = por %p110, %p111
    %p113 = scmp.ne.s32.totalorder %s102, %s103
    %p114 = scmp.eq.s32.totalorder %s21, 0
    %p115 = por %p113, %p114
    %p116 = scmp.ne.s32.totalorder %s102, %s103
    %p117 = scmp.eq.s32.totalorder %s22, 1
    %p118 = por %p116, %p117
    %p120 = scmp.ne.s32.totalorder %s103, %s119
    %p121 = scmp.eq.s32.totalorder %s22, 0
    %p122 = por %p120, %p121
    %p123 = scmp.le.s32.totalorder 1, %s16
    %p124 = scmp.lt.s32.totalorder %s16, 3
    %p125 = pnand %p123, %p124
    %p126 = pneg %p125
    // Predicated region
    $region9: #{similarity_adjacency.3} parent=5 // pred_check
      _
    $region10: #{similarity_adjacency.3} parent=5 // pred_check_branch
      %128 = sbr.rel (%p125) target = $region12
    $region11: #{similarity_adjacency.3} parent=5 // pred_region
      %s129 = ssub.s32 %s16, 1
      // Predicated region
      $region13: #{similarity_adjacency.3} parent=11 // pred_check
        %p130 = pneg %p89
      $region14: #{similarity_adjacency.3} parent=11 // pred_check_branch
        %132 = sbr.rel (%p130) target = $region16
      $region15: #{similarity_adjacency.3} parent=11 // pred_region
        _
      $region16: #{similarity_adjacency.3} parent=11 // pred_fallthru
        _
    $region12: #{similarity_adjacency.3} parent=5 // pred_fallthru
      _
    %p133 = scmp.lt.s32.totalorder %s16, 2
    // Predicated region
    $region17: #{similarity_adjacency.3} parent=5 // pred_check
      %p134 = pneg %p133
    $region18: #{similarity_adjacency.3} parent=5 // pred_check_branch
      %136 = sbr.rel (%p134) target = $region20
    $region19: #{similarity_adjacency.3} parent=5 // pred_region
      // Predicated region
      $region21: #{similarity_adjacency.3} parent=19 // pred_check
        %p137 = pneg %p36
      $region22: #{similarity_adjacency.3} parent=19 // pred_check_branch
        %139 = sbr.rel (%p137) target = $region24
      $region23: #{similarity_adjacency.3} parent=19 // pred_region
        %p140 = scmp.lt.s32.totalorder %s16, 1
        %s141 = scalar_select %p140, %s16, 1
        %s142 = smul.addr %s141, 16
        %s143 = smul.addr %s142, 8
        %s144 = scalar_lea.vmem %s1, %s143
      $region24: #{similarity_adjacency.3} parent=19 // pred_fallthru
        _
      // Predicated region
      $region25: #{similarity_adjacency.3} parent=19 // pred_check
        %p145 = pneg %p62
      $region26: #{similarity_adjacency.3} parent=19 // pred_check_branch
        %147 = sbr.rel (%p145) target = $region28
      $region27: #{similarity_adjacency.3} parent=19 // pred_region
        %p148 = scmp.lt.s32.totalorder %s16, 1
        %s149 = scalar_select %p148, %s16, 1
        %s150 = smul.addr %s149, 16
        %s151 = smul.addr %s150, 8
        %s152 = scalar_lea.vmem %s2, %s151
      $region28: #{similarity_adjacency.3} parent=19 // pred_fallthru
        _
    $region20: #{similarity_adjacency.3} parent=5 // pred_fallthru
      _
    %p153 = scmp.le.s32.totalorder 1, %s16
    %p154 = scmp.lt.s32.totalorder %s16, 3
    %p155 = pnand %p153, %p154
    %p156 = pneg %p155
    // Predicated region
    $region29: #{similarity_adjacency.3} parent=5 // pred_check
      _
    $region30: #{similarity_adjacency.3} parent=5 // pred_check_branch
      %158 = sbr.rel (%p155) target = $region32
    $region31: #{similarity_adjacency.3} parent=5 // pred_region
      %s159 = ssub.s32 %s16, 1
      %p160 = scmp.lt.s32.totalorder %s21, 1
      %s161 = scalar_select %p160, %s21, 1
      %s162 = smul.addr %s161, 16
      %s163 = smul.addr %s162, 8
      %s164 = scalar_lea.vmem %s1, %s163
      %p165 = pneg %p42
      %p166 = pneg %p39
      %p167 = scmp.lt.s32.totalorder %s21, 1
      %s168 = scalar_select %p167, %s21, 1
      %s169 = smul.addr %s168, 16
      %s170 = smul.addr %s169, 8
      %s171 = scalar_lea.vmem %s2, %s170
      %p172 = pneg %p68
      %p173 = pneg %p65
      %p174 = pneg %p89
      %p175 = pneg %p86
      %p176 = pneg %p115
      %p177 = pneg %p112
      %p178 = scmp.lt.s32.totalorder %s21, 1
      %s179 = scalar_select %p178, %s21, 1
      %s180 = smul.addr %s179, 16
      %s181 = smul.addr %s180, 8
      %s182 = scalar_lea.vmem %s4, %s181
      %p183 = scmp.lt.s32.totalorder %s21, 1
      %s184 = scalar_select %p183, %s21, 1
      %s185 = smul.addr %s184, 16
      %s186 = smul.addr %s185, 8
      %s187 = scalar_lea.vmem %s1, %s186
      %p188 = scmp.lt.s32.totalorder %s21, 1
      %s189 = scalar_select %p188, %s21, 1
      %s190 = smul.addr %s189, 16
      %s191 = smul.addr %s190, 8
      %s192 = scalar_lea.vmem %s2, %s191
      %p193 = scmp.lt.s32.totalorder %s21, 1
      %s194 = scalar_select %p193, %s21, 1
      %s195 = smul.addr %s194, 16
      %s196 = smul.addr %s195, 8
      %s197 = scalar_lea.vmem %s4, %s196
      %s198 = sld [smem:[#allocation3 + %s21]]
      %v199 = vld [vmem:[%s192] sm:$0xff]
      %v200 = vld [vmem:[%s192 + $0x8] sm:$0xff]
      %v201 = vld [vmem:[%s192 + $0x10] sm:$0xff]
      %v202 = vld [vmem:[%s192 + $0x18] sm:$0xff]
      %v203 = vld [vmem:[%s192 + $0x20] sm:$0xff]
      %v204 = vld [vmem:[%s192 + $0x28] sm:$0xff]
      %v205 = vld [vmem:[%s192 + $0x30] sm:$0xff]
      %v206 = vld [vmem:[%s192 + $0x38] sm:$0xff]
      %v207 = vld [vmem:[%s192 + $0x40] sm:$0xff]
      %v208 = vld [vmem:[%s192 + $0x48] sm:$0xff]
      %v209 = vld [vmem:[%s192 + $0x50] sm:$0xff]
      %v210 = vld [vmem:[%s192 + $0x58] sm:$0xff]
      %v211 = vld [vmem:[%s192 + $0x60] sm:$0xff]
      %v212 = vld [vmem:[%s192 + $0x68] sm:$0xff]
      %v213 = vld [vmem:[%s192 + $0x70] sm:$0xff]
      %v214 = vld [vmem:[%s192 + $0x78] sm:$0xff]
      %v215 = vld [vmem:[%s3] sm:$0x1]
      %v216 = vlaneseq
      %v217 = vand.u32 %v216, 127
      %v218 = vstv %s198
      %vm219 = vcmp.lt.s32.totalorder %v217, %v218
      %220 = vst [vmem:[%s197] sm:$0xff] 0.0
      %221 = vst [vmem:[%s197 + $0x8] sm:$0xff] 0.0
      %222 = vst [vmem:[%s197 + $0x10] sm:$0xff] 0.0
      %223 = vst [vmem:[%s197 + $0x18] sm:$0xff] 0.0
      %224 = vst [vmem:[%s197 + $0x20] sm:$0xff] 0.0
      %225 = vst [vmem:[%s197 + $0x28] sm:$0xff] 0.0
      %226 = vst [vmem:[%s197 + $0x30] sm:$0xff] 0.0
      %227 = vst [vmem:[%s197 + $0x38] sm:$0xff] 0.0
      %228 = vst [vmem:[%s197 + $0x40] sm:$0xff] 0.0
      %229 = vst [vmem:[%s197 + $0x48] sm:$0xff] 0.0
      %230 = vst [vmem:[%s197 + $0x50] sm:$0xff] 0.0
      %231 = vst [vmem:[%s197 + $0x58] sm:$0xff] 0.0
      %232 = vst [vmem:[%s197 + $0x60] sm:$0xff] 0.0
      %233 = vst [vmem:[%s197 + $0x68] sm:$0xff] 0.0
      %234 = vst [vmem:[%s197 + $0x70] sm:$0xff] 0.0
      %235 = vst [vmem:[%s197 + $0x78] sm:$0xff] 0.0
      %s236 = sadd.s32 %s198, 7
      %p237 = scmp.lt.s32.totalorder %s236, 0
      %s238 = ssub.s32 0, %s236
      %s239 = scalar_select %p237, %s238, %s236
      %s240 = sshrl.u32 %s239, 3
      %s241 = ssub.s32 0, %s240
      %s242 = scalar_select %p237, %s241, %s240
      // While loop
      $region33: #{similarity_adjacency.3} parent=31 // loop_pre_header
        _
      $region34: #{similarity_adjacency.3} parent=31 // loop_header
        %s244 = sphi 0, %s246
        %p245 = scmp.ge.s32.totalorder %s244, %s242
      $region35: #{similarity_adjacency.3} parent=31 // loop_header_branch
        %248 = sbr.rel (%p245) target = $region39
      $region36: #{similarity_adjacency.3} parent=31 // loop_body
        %s249 = smul.u32 %s244, 8
        %s250 = scalar_lea.vmem %s187, %s249
        %v251 = vld [vmem:[%s250] sm:$0xff]
        %v253 = vcombine.high %v251, %v251
        %v255 = vunpack.c.l.s4 1966171168
        %v256 = vunpack.c.0.s8 %v255
        %v257 = vlaneseq
        %v258 = vshrl.u32 %v257, 7
        %v259 = vsub.s32 %v256, %v258
        %v260 = vrot.slane %v251, %v259
        %v262 = vunpack.c.l.s4 1966171168
        %v263 = vunpack.c.0.s8 %v262
        %v264 = vlaneseq
        %v265 = vshrl.u32 %v264, 7
        %v266 = vsub.s32 %v263, %v265
        %v267 = vrot.slane %v253, %v266
        %v268 = vcombine.high %v260, %v260
        %v269 = vcombine.high %v267, %v267
        %v271 = vunpack.c.l.s4 1966171168
        %v272 = vunpack.c.0.s8 %v271
        %v273 = vlaneseq
        %v274 = vshrl.u32 %v273, 7
        %v275 = vsub.s32 %v272, %v274
        %v276 = vrot.slane %v260, %v275
        %v278 = vunpack.c.l.s4 1966171168
        %v279 = vunpack.c.0.s8 %v278
        %v280 = vlaneseq
        %v281 = vshrl.u32 %v280, 7
        %v282 = vsub.s32 %v279, %v281
        %v283 = vrot.slane %v267, %v282
        %v285 = vunpack.c.l.s4 1966171168
        %v286 = vunpack.c.0.s8 %v285
        %v287 = vlaneseq
        %v288 = vshrl.u32 %v287, 7
        %v289 = vsub.s32 %v286, %v288
        %v290 = vrot.slane %v268, %v289
        %v292 = vunpack.c.l.s4 1966171168
        %v293 = vunpack.c.0.s8 %v292
        %v294 = vlaneseq
        %v295 = vshrl.u32 %v294, 7
        %v296 = vsub.s32 %v293, %v295
        %v297 = vrot.slane %v269, %v296
        %v298 = vcombine.high %v276, %v276
        %v299 = vcombine.high %v283, %v283
        %v300 = vcombine.high %v290, %v290
        %v301 = vcombine.high %v297, %v297
        %v302 = vlaneseq
        %v303 = vshrl.u32 %v302, 7
        %v304 = vsub.s32 0, %v303
        %v305 = vrot.slane %v276, %v304
        %v306 = vlaneseq
        %v307 = vshrl.u32 %v306, 7
        %v308 = vsub.s32 0, %v307
        %v309 = vrot.slane %v290, %v308
        %v310 = vlaneseq
        %v311 = vshrl.u32 %v310, 7
        %v312 = vsub.s32 0, %v311
        %v313 = vrot.slane %v298, %v312
        %v314 = vlaneseq
        %v315 = vshrl.u32 %v314, 7
        %v316 = vsub.s32 0, %v315
        %v317 = vrot.slane %v300, %v316
        %v318 = vlaneseq
        %v319 = vshrl.u32 %v318, 7
        %v320 = vsub.s32 0, %v319
        %v321 = vrot.slane %v283, %v320
        %v322 = vlaneseq
        %v323 = vshrl.u32 %v322, 7
        %v324 = vsub.s32 0, %v323
        %v325 = vrot.slane %v297, %v324
        %v326 = vlaneseq
        %v327 = vshrl.u32 %v326, 7
        %v328 = vsub.s32 0, %v327
        %v329 = vrot.slane %v299, %v328
        %v330 = vlaneseq
        %v331 = vshrl.u32 %v330, 7
        %v332 = vsub.s32 0, %v331
        %v333 = vrot.slane %v301, %v332
        %v342 = vadd.f32 %v305, %v199
        %v343 = vadd.f32 %v305, %v200
        %v344 = vadd.f32 %v305, %v201
        %v345 = vadd.f32 %v305, %v202
        %v346 = vadd.f32 %v305, %v203
        %v347 = vadd.f32 %v305, %v204
        %v348 = vadd.f32 %v305, %v205
        %v349 = vadd.f32 %v305, %v206
        %v350 = vadd.f32 %v305, %v207
        %v351 = vadd.f32 %v305, %v208
        %v352 = vadd.f32 %v305, %v209
        %v353 = vadd.f32 %v305, %v210
        %v354 = vadd.f32 %v305, %v211
        %v355 = vadd.f32 %v305, %v212
        %v356 = vadd.f32 %v305, %v213
        %v357 = vadd.f32 %v305, %v214
        %v358 = vadd.f32 %v309, %v199
        %v359 = vadd.f32 %v309, %v200
        %v360 = vadd.f32 %v309, %v201
        %v361 = vadd.f32 %v309, %v202
        %v362 = vadd.f32 %v309, %v203
        %v363 = vadd.f32 %v309, %v204
        %v364 = vadd.f32 %v309, %v205
        %v365 = vadd.f32 %v309, %v206
        %v366 = vadd.f32 %v309, %v207
        %v367 = vadd.f32 %v309, %v208
        %v368 = vadd.f32 %v309, %v209
        %v369 = vadd.f32 %v309, %v210
        %v370 = vadd.f32 %v309, %v211
        %v371 = vadd.f32 %v309, %v212
        %v372 = vadd.f32 %v309, %v213
        %v373 = vadd.f32 %v309, %v214
        %v374 = vadd.f32 %v313, %v199
        %v375 = vadd.f32 %v313, %v200
        %v376 = vadd.f32 %v313, %v201
        %v377 = vadd.f32 %v313, %v202
        %v378 = vadd.f32 %v313, %v203
        %v379 = vadd.f32 %v313, %v204
        %v380 = vadd.f32 %v313, %v205
        %v381 = vadd.f32 %v313, %v206
        %v382 = vadd.f32 %v313, %v207
        %v383 = vadd.f32 %v313, %v208
        %v384 = vadd.f32 %v313, %v209
        %v385 = vadd.f32 %v313, %v210
        %v386 = vadd.f32 %v313, %v211
        %v387 = vadd.f32 %v313, %v212
        %v388 = vadd.f32 %v313, %v213
        %v389 = vadd.f32 %v313, %v214
        %v390 = vadd.f32 %v317, %v199
        %v391 = vadd.f32 %v317, %v200
        %v392 = vadd.f32 %v317, %v201
        %v393 = vadd.f32 %v317, %v202
        %v394 = vadd.f32 %v317, %v203
        %v395 = vadd.f32 %v317, %v204
        %v396 = vadd.f32 %v317, %v205
        %v397 = vadd.f32 %v317, %v206
        %v398 = vadd.f32 %v317, %v207
        %v399 = vadd.f32 %v317, %v208
        %v400 = vadd.f32 %v317, %v209
        %v401 = vadd.f32 %v317, %v210
        %v402 = vadd.f32 %v317, %v211
        %v403 = vadd.f32 %v317, %v212
        %v404 = vadd.f32 %v317, %v213
        %v405 = vadd.f32 %v317, %v214
        %v406 = vadd.f32 %v321, %v199
        %v407 = vadd.f32 %v321, %v200
        %v408 = vadd.f32 %v321, %v201
        %v409 = vadd.f32 %v321, %v202
        %v410 = vadd.f32 %v321, %v203
        %v411 = vadd.f32 %v321, %v204
        %v412 = vadd.f32 %v321, %v205
        %v413 = vadd.f32 %v321, %v206
        %v414 = vadd.f32 %v321, %v207
        %v415 = vadd.f32 %v321, %v208
        %v416 = vadd.f32 %v321, %v209
        %v417 = vadd.f32 %v321, %v210
        %v418 = vadd.f32 %v321, %v211
        %v419 = vadd.f32 %v321, %v212
        %v420 = vadd.f32 %v321, %v213
        %v421 = vadd.f32 %v321, %v214
        %v422 = vadd.f32 %v325, %v199
        %v423 = vadd.f32 %v325, %v200
        %v424 = vadd.f32 %v325, %v201
        %v425 = vadd.f32 %v325, %v202
        %v426 = vadd.f32 %v325, %v203
        %v427 = vadd.f32 %v325, %v204
        %v428 = vadd.f32 %v325, %v205
        %v429 = vadd.f32 %v325, %v206
        %v430 = vadd.f32 %v325, %v207
        %v431 = vadd.f32 %v325, %v208
        %v432 = vadd.f32 %v325, %v209
        %v433 = vadd.f32 %v325, %v210
        %v434 = vadd.f32 %v325, %v211
        %v435 = vadd.f32 %v325, %v212
        %v436 = vadd.f32 %v325, %v213
        %v437 = vadd.f32 %v325, %v214
        %v438 = vadd.f32 %v329, %v199
        %v439 = vadd.f32 %v329, %v200
        %v440 = vadd.f32 %v329, %v201
        %v441 = vadd.f32 %v329, %v202
        %v442 = vadd.f32 %v329, %v203
        %v443 = vadd.f32 %v329, %v204
        %v444 = vadd.f32 %v329, %v205
        %v445 = vadd.f32 %v329, %v206
        %v446 = vadd.f32 %v329, %v207
        %v447 = vadd.f32 %v329, %v208
        %v448 = vadd.f32 %v329, %v209
        %v449 = vadd.f32 %v329, %v210
        %v450 = vadd.f32 %v329, %v211
        %v451 = vadd.f32 %v329, %v212
        %v452 = vadd.f32 %v329, %v213
        %v453 = vadd.f32 %v329, %v214
        %v454 = vadd.f32 %v333, %v199
        %v455 = vadd.f32 %v333, %v200
        %v456 = vadd.f32 %v333, %v201
        %v457 = vadd.f32 %v333, %v202
        %v458 = vadd.f32 %v333, %v203
        %v459 = vadd.f32 %v333, %v204
        %v460 = vadd.f32 %v333, %v205
        %v461 = vadd.f32 %v333, %v206
        %v462 = vadd.f32 %v333, %v207
        %v463 = vadd.f32 %v333, %v208
        %v464 = vadd.f32 %v333, %v209
        %v465 = vadd.f32 %v333, %v210
        %v466 = vadd.f32 %v333, %v211
        %v467 = vadd.f32 %v333, %v212
        %v468 = vadd.f32 %v333, %v213
        %v469 = vadd.f32 %v333, %v214
        %v470 = vmax.f32 %v342, 0.0
        %v471 = vmax.f32 %v343, 0.0
        %v472 = vmax.f32 %v344, 0.0
        %v473 = vmax.f32 %v345, 0.0
        %v474 = vmax.f32 %v346, 0.0
        %v475 = vmax.f32 %v347, 0.0
        %v476 = vmax.f32 %v348, 0.0
        %v477 = vmax.f32 %v349, 0.0
        %v478 = vmax.f32 %v350, 0.0
        %v479 = vmax.f32 %v351, 0.0
        %v480 = vmax.f32 %v352, 0.0
        %v481 = vmax.f32 %v353, 0.0
        %v482 = vmax.f32 %v354, 0.0
        %v483 = vmax.f32 %v355, 0.0
        %v484 = vmax.f32 %v356, 0.0
        %v485 = vmax.f32 %v357, 0.0
        %v486 = vmax.f32 %v358, 0.0
        %v487 = vmax.f32 %v359, 0.0
        %v488 = vmax.f32 %v360, 0.0
        %v489 = vmax.f32 %v361, 0.0
        %v490 = vmax.f32 %v362, 0.0
        %v491 = vmax.f32 %v363, 0.0
        %v492 = vmax.f32 %v364, 0.0
        %v493 = vmax.f32 %v365, 0.0
        %v494 = vmax.f32 %v366, 0.0
        %v495 = vmax.f32 %v367, 0.0
        %v496 = vmax.f32 %v368, 0.0
        %v497 = vmax.f32 %v369, 0.0
        %v498 = vmax.f32 %v370, 0.0
        %v499 = vmax.f32 %v371, 0.0
        %v500 = vmax.f32 %v372, 0.0
        %v501 = vmax.f32 %v373, 0.0
        %v502 = vmax.f32 %v374, 0.0
        %v503 = vmax.f32 %v375, 0.0
        %v504 = vmax.f32 %v376, 0.0
        %v505 = vmax.f32 %v377, 0.0
        %v506 = vmax.f32 %v378, 0.0
        %v507 = vmax.f32 %v379, 0.0
        %v508 = vmax.f32 %v380, 0.0
        %v509 = vmax.f32 %v381, 0.0
        %v510 = vmax.f32 %v382, 0.0
        %v511 = vmax.f32 %v383, 0.0
        %v512 = vmax.f32 %v384, 0.0
        %v513 = vmax.f32 %v385, 0.0
        %v514 = vmax.f32 %v386, 0.0
        %v515 = vmax.f32 %v387, 0.0
        %v516 = vmax.f32 %v388, 0.0
        %v517 = vmax.f32 %v389, 0.0
        %v518 = vmax.f32 %v390, 0.0
        %v519 = vmax.f32 %v391, 0.0
        %v520 = vmax.f32 %v392, 0.0
        %v521 = vmax.f32 %v393, 0.0
        %v522 = vmax.f32 %v394, 0.0
        %v523 = vmax.f32 %v395, 0.0
        %v524 = vmax.f32 %v396, 0.0
        %v525 = vmax.f32 %v397, 0.0
        %v526 = vmax.f32 %v398, 0.0
        %v527 = vmax.f32 %v399, 0.0
        %v528 = vmax.f32 %v400, 0.0
        %v529 = vmax.f32 %v401, 0.0
        %v530 = vmax.f32 %v402, 0.0
        %v531 = vmax.f32 %v403, 0.0
        %v532 = vmax.f32 %v404, 0.0
        %v533 = vmax.f32 %v405, 0.0
        %v534 = vmax.f32 %v406, 0.0
        %v535 = vmax.f32 %v407, 0.0
        %v536 = vmax.f32 %v408, 0.0
        %v537 = vmax.f32 %v409, 0.0
        %v538 = vmax.f32 %v410, 0.0
        %v539 = vmax.f32 %v411, 0.0
        %v540 = vmax.f32 %v412, 0.0
        %v541 = vmax.f32 %v413, 0.0
        %v542 = vmax.f32 %v414, 0.0
        %v543 = vmax.f32 %v415, 0.0
        %v544 = vmax.f32 %v416, 0.0
        %v545 = vmax.f32 %v417, 0.0
        %v546 = vmax.f32 %v418, 0.0
        %v547 = vmax.f32 %v419, 0.0
        %v548 = vmax.f32 %v420, 0.0
        %v549 = vmax.f32 %v421, 0.0
        %v550 = vmax.f32 %v422, 0.0
        %v551 = vmax.f32 %v423, 0.0
        %v552 = vmax.f32 %v424, 0.0
        %v553 = vmax.f32 %v425, 0.0
        %v554 = vmax.f32 %v426, 0.0
        %v555 = vmax.f32 %v427, 0.0
        %v556 = vmax.f32 %v428, 0.0
        %v557 = vmax.f32 %v429, 0.0
        %v558 = vmax.f32 %v430, 0.0
        %v559 = vmax.f32 %v431, 0.0
        %v560 = vmax.f32 %v432, 0.0
        %v561 = vmax.f32 %v433, 0.0
        %v562 = vmax.f32 %v434, 0.0
        %v563 = vmax.f32 %v435, 0.0
        %v564 = vmax.f32 %v436, 0.0
        %v565 = vmax.f32 %v437, 0.0
        %v566 = vmax.f32 %v438, 0.0
        %v567 = vmax.f32 %v439, 0.0
        %v568 = vmax.f32 %v440, 0.0
        %v569 = vmax.f32 %v441, 0.0
        %v570 = vmax.f32 %v442, 0.0
        %v571 = vmax.f32 %v443, 0.0
        %v572 = vmax.f32 %v444, 0.0
        %v573 = vmax.f32 %v445, 0.0
        %v574 = vmax.f32 %v446, 0.0
        %v575 = vmax.f32 %v447, 0.0
        %v576 = vmax.f32 %v448, 0.0
        %v577 = vmax.f32 %v449, 0.0
        %v578 = vmax.f32 %v450, 0.0
        %v579 = vmax.f32 %v451, 0.0
        %v580 = vmax.f32 %v452, 0.0
        %v581 = vmax.f32 %v453, 0.0
        %v582 = vmax.f32 %v454, 0.0
        %v583 = vmax.f32 %v455, 0.0
        %v584 = vmax.f32 %v456, 0.0
        %v585 = vmax.f32 %v457, 0.0
        %v586 = vmax.f32 %v458, 0.0
        %v587 = vmax.f32 %v459, 0.0
        %v588 = vmax.f32 %v460, 0.0
        %v589 = vmax.f32 %v461, 0.0
        %v590 = vmax.f32 %v462, 0.0
        %v591 = vmax.f32 %v463, 0.0
        %v592 = vmax.f32 %v464, 0.0
        %v593 = vmax.f32 %v465, 0.0
        %v594 = vmax.f32 %v466, 0.0
        %v595 = vmax.f32 %v467, 0.0
        %v596 = vmax.f32 %v468, 0.0
        %v597 = vmax.f32 %v469, 0.0
        %v599 = vlaneseq
        %v600 = vshrl.u32 %v599, 7
        %v601 = vsub.s32 0, %v600
        %v602 = vrot.slane %v215, %v601
        %v604 = vmul.f32 %v470, %v602
        %v605 = vmul.f32 %v471, %v602
        %v606 = vmul.f32 %v472, %v602
        %v607 = vmul.f32 %v473, %v602
        %v608 = vmul.f32 %v474, %v602
        %v609 = vmul.f32 %v475, %v602
        %v610 = vmul.f32 %v476, %v602
        %v611 = vmul.f32 %v477, %v602
        %v612 = vmul.f32 %v478, %v602
        %v613 = vmul.f32 %v479, %v602
        %v614 = vmul.f32 %v480, %v602
        %v615 = vmul.f32 %v481, %v602
        %v616 = vmul.f32 %v482, %v602
        %v617 = vmul.f32 %v483, %v602
        %v618 = vmul.f32 %v484, %v602
        %v619 = vmul.f32 %v485, %v602
        %v620 = vmul.f32 %v486, %v602
        %v621 = vmul.f32 %v487, %v602
        %v622 = vmul.f32 %v488, %v602
        %v623 = vmul.f32 %v489, %v602
        %v624 = vmul.f32 %v490, %v602
        %v625 = vmul.f32 %v491, %v602
        %v626 = vmul.f32 %v492, %v602
        %v627 = vmul.f32 %v493, %v602
        %v628 = vmul.f32 %v494, %v602
        %v629 = vmul.f32 %v495, %v602
        %v630 = vmul.f32 %v496, %v602
        %v631 = vmul.f32 %v497, %v602
        %v632 = vmul.f32 %v498, %v602
        %v633 = vmul.f32 %v499, %v602
        %v634 = vmul.f32 %v500, %v602
        %v635 = vmul.f32 %v501, %v602
        %v636 = vmul.f32 %v502, %v602
        %v637 = vmul.f32 %v503, %v602
        %v638 = vmul.f32 %v504, %v602
        %v639 = vmul.f32 %v505, %v602
        %v640 = vmul.f32 %v506, %v602
        %v641 = vmul.f32 %v507, %v602
        %v642 = vmul.f32 %v508, %v602
        %v643 = vmul.f32 %v509, %v602
        %v644 = vmul.f32 %v510, %v602
        %v645 = vmul.f32 %v511, %v602
        %v646 = vmul.f32 %v512, %v602
        %v647 = vmul.f32 %v513, %v602
        %v648 = vmul.f32 %v514, %v602
        %v649 = vmul.f32 %v515, %v602
        %v650 = vmul.f32 %v516, %v602
        %v651 = vmul.f32 %v517, %v602
        %v652 = vmul.f32 %v518, %v602
        %v653 = vmul.f32 %v519, %v602
        %v654 = vmul.f32 %v520, %v602
        %v655 = vmul.f32 %v521, %v602
        %v656 = vmul.f32 %v522, %v602
        %v657 = vmul.f32 %v523, %v602
        %v658 = vmul.f32 %v524, %v602
        %v659 = vmul.f32 %v525, %v602
        %v660 = vmul.f32 %v526, %v602
        %v661 = vmul.f32 %v527, %v602
        %v662 = vmul.f32 %v528, %v602
        %v663 = vmul.f32 %v529, %v602
        %v664 = vmul.f32 %v530, %v602
        %v665 = vmul.f32 %v531, %v602
        %v666 = vmul.f32 %v532, %v602
        %v667 = vmul.f32 %v533, %v602
        %v668 = vmul.f32 %v534, %v602
        %v669 = vmul.f32 %v535, %v602
        %v670 = vmul.f32 %v536, %v602
        %v671 = vmul.f32 %v537, %v602
        %v672 = vmul.f32 %v538, %v602
        %v673 = vmul.f32 %v539, %v602
        %v674 = vmul.f32 %v540, %v602
        %v675 = vmul.f32 %v541, %v602
        %v676 = vmul.f32 %v542, %v602
        %v677 = vmul.f32 %v543, %v602
        %v678 = vmul.f32 %v544, %v602
        %v679 = vmul.f32 %v545, %v602
        %v680 = vmul.f32 %v546, %v602
        %v681 = vmul.f32 %v547, %v602
        %v682 = vmul.f32 %v548, %v602
        %v683 = vmul.f32 %v549, %v602
        %v684 = vmul.f32 %v550, %v602
        %v685 = vmul.f32 %v551, %v602
        %v686 = vmul.f32 %v552, %v602
        %v687 = vmul.f32 %v553, %v602
        %v688 = vmul.f32 %v554, %v602
        %v689 = vmul.f32 %v555, %v602
        %v690 = vmul.f32 %v556, %v602
        %v691 = vmul.f32 %v557, %v602
        %v692 = vmul.f32 %v558, %v602
        %v693 = vmul.f32 %v559, %v602
        %v694 = vmul.f32 %v560, %v602
        %v695 = vmul.f32 %v561, %v602
        %v696 = vmul.f32 %v562, %v602
        %v697 = vmul.f32 %v563, %v602
        %v698 = vmul.f32 %v564, %v602
        %v699 = vmul.f32 %v565, %v602
        %v700 = vmul.f32 %v566, %v602
        %v701 = vmul.f32 %v567, %v602
        %v702 = vmul.f32 %v568, %v602
        %v703 = vmul.f32 %v569, %v602
        %v704 = vmul.f32 %v570, %v602
        %v705 = vmul.f32 %v571, %v602
        %v706 = vmul.f32 %v572, %v602
        %v707 = vmul.f32 %v573, %v602
        %v708 = vmul.f32 %v574, %v602
        %v709 = vmul.f32 %v575, %v602
        %v710 = vmul.f32 %v576, %v602
        %v711 = vmul.f32 %v577, %v602
        %v712 = vmul.f32 %v578, %v602
        %v713 = vmul.f32 %v579, %v602
        %v714 = vmul.f32 %v580, %v602
        %v715 = vmul.f32 %v581, %v602
        %v716 = vmul.f32 %v582, %v602
        %v717 = vmul.f32 %v583, %v602
        %v718 = vmul.f32 %v584, %v602
        %v719 = vmul.f32 %v585, %v602
        %v720 = vmul.f32 %v586, %v602
        %v721 = vmul.f32 %v587, %v602
        %v722 = vmul.f32 %v588, %v602
        %v723 = vmul.f32 %v589, %v602
        %v724 = vmul.f32 %v590, %v602
        %v725 = vmul.f32 %v591, %v602
        %v726 = vmul.f32 %v592, %v602
        %v727 = vmul.f32 %v593, %v602
        %v728 = vmul.f32 %v594, %v602
        %v729 = vmul.f32 %v595, %v602
        %v730 = vmul.f32 %v596, %v602
        %v731 = vmul.f32 %v597, %v602
        %732 = vadd.xlane.f32.xlu0 %v604
        %v733 = vpop.xlane.xlu0 %732
        %734 = vadd.xlane.f32.xlu0 %v605
        %v735 = vpop.xlane.xlu0 %734
        %736 = vadd.xlane.f32.xlu0 %v606
        %v737 = vpop.xlane.xlu0 %736
        %738 = vadd.xlane.f32.xlu0 %v607
        %v739 = vpop.xlane.xlu0 %738
        %740 = vadd.xlane.f32.xlu0 %v608
        %v741 = vpop.xlane.xlu0 %740
        %742 = vadd.xlane.f32.xlu0 %v609
        %v743 = vpop.xlane.xlu0 %742
        %744 = vadd.xlane.f32.xlu0 %v610
        %v745 = vpop.xlane.xlu0 %744
        %746 = vadd.xlane.f32.xlu0 %v611
        %v747 = vpop.xlane.xlu0 %746
        %748 = vadd.xlane.f32.xlu0 %v612
        %v749 = vpop.xlane.xlu0 %748
        %750 = vadd.xlane.f32.xlu0 %v613
        %v751 = vpop.xlane.xlu0 %750
        %752 = vadd.xlane.f32.xlu0 %v614
        %v753 = vpop.xlane.xlu0 %752
        %754 = vadd.xlane.f32.xlu0 %v615
        %v755 = vpop.xlane.xlu0 %754
        %756 = vadd.xlane.f32.xlu0 %v616
        %v757 = vpop.xlane.xlu0 %756
        %758 = vadd.xlane.f32.xlu0 %v617
        %v759 = vpop.xlane.xlu0 %758
        %760 = vadd.xlane.f32.xlu0 %v618
        %v761 = vpop.xlane.xlu0 %760
        %762 = vadd.xlane.f32.xlu0 %v619
        %v763 = vpop.xlane.xlu0 %762
        %764 = vadd.xlane.f32.xlu0 %v620
        %v765 = vpop.xlane.xlu0 %764
        %766 = vadd.xlane.f32.xlu0 %v621
        %v767 = vpop.xlane.xlu0 %766
        %768 = vadd.xlane.f32.xlu0 %v622
        %v769 = vpop.xlane.xlu0 %768
        %770 = vadd.xlane.f32.xlu0 %v623
        %v771 = vpop.xlane.xlu0 %770
        %772 = vadd.xlane.f32.xlu0 %v624
        %v773 = vpop.xlane.xlu0 %772
        %774 = vadd.xlane.f32.xlu0 %v625
        %v775 = vpop.xlane.xlu0 %774
        %776 = vadd.xlane.f32.xlu0 %v626
        %v777 = vpop.xlane.xlu0 %776
        %778 = vadd.xlane.f32.xlu0 %v627
        %v779 = vpop.xlane.xlu0 %778
        %780 = vadd.xlane.f32.xlu0 %v628
        %v781 = vpop.xlane.xlu0 %780
        %782 = vadd.xlane.f32.xlu0 %v629
        %v783 = vpop.xlane.xlu0 %782
        %784 = vadd.xlane.f32.xlu0 %v630
        %v785 = vpop.xlane.xlu0 %784
        %786 = vadd.xlane.f32.xlu0 %v631
        %v787 = vpop.xlane.xlu0 %786
        %788 = vadd.xlane.f32.xlu0 %v632
        %v789 = vpop.xlane.xlu0 %788
        %790 = vadd.xlane.f32.xlu0 %v633
        %v791 = vpop.xlane.xlu0 %790
        %792 = vadd.xlane.f32.xlu0 %v634
        %v793 = vpop.xlane.xlu0 %792
        %794 = vadd.xlane.f32.xlu0 %v635
        %v795 = vpop.xlane.xlu0 %794
        %796 = vadd.xlane.f32.xlu0 %v636
        %v797 = vpop.xlane.xlu0 %796
        %798 = vadd.xlane.f32.xlu0 %v637
        %v799 = vpop.xlane.xlu0 %798
        %800 = vadd.xlane.f32.xlu0 %v638
        %v801 = vpop.xlane.xlu0 %800
        %802 = vadd.xlane.f32.xlu0 %v639
        %v803 = vpop.xlane.xlu0 %802
        %804 = vadd.xlane.f32.xlu0 %v640
        %v805 = vpop.xlane.xlu0 %804
        %806 = vadd.xlane.f32.xlu0 %v641
        %v807 = vpop.xlane.xlu0 %806
        %808 = vadd.xlane.f32.xlu0 %v642
        %v809 = vpop.xlane.xlu0 %808
        %810 = vadd.xlane.f32.xlu0 %v643
        %v811 = vpop.xlane.xlu0 %810
        %812 = vadd.xlane.f32.xlu0 %v644
        %v813 = vpop.xlane.xlu0 %812
        %814 = vadd.xlane.f32.xlu0 %v645
        %v815 = vpop.xlane.xlu0 %814
        %816 = vadd.xlane.f32.xlu0 %v646
        %v817 = vpop.xlane.xlu0 %816
        %818 = vadd.xlane.f32.xlu0 %v647
        %v819 = vpop.xlane.xlu0 %818
        %820 = vadd.xlane.f32.xlu0 %v648
        %v821 = vpop.xlane.xlu0 %820
        %822 = vadd.xlane.f32.xlu0 %v649
        %v823 = vpop.xlane.xlu0 %822
        %824 = vadd.xlane.f32.xlu0 %v650
        %v825 = vpop.xlane.xlu0 %824
        %826 = vadd.xlane.f32.xlu0 %v651
        %v827 = vpop.xlane.xlu0 %826
        %828 = vadd.xlane.f32.xlu0 %v652
        %v829 = vpop.xlane.xlu0 %828
        %830 = vadd.xlane.f32.xlu0 %v653
        %v831 = vpop.xlane.xlu0 %830
        %832 = vadd.xlane.f32.xlu0 %v654
        %v833 = vpop.xlane.xlu0 %832
        %834 = vadd.xlane.f32.xlu0 %v655
        %v835 = vpop.xlane.xlu0 %834
        %836 = vadd.xlane.f32.xlu0 %v656
        %v837 = vpop.xlane.xlu0 %836
        %838 = vadd.xlane.f32.xlu0 %v657
        %v839 = vpop.xlane.xlu0 %838
        %840 = vadd.xlane.f32.xlu0 %v658
        %v841 = vpop.xlane.xlu0 %840
        %842 = vadd.xlane.f32.xlu0 %v659
        %v843 = vpop.xlane.xlu0 %842
        %844 = vadd.xlane.f32.xlu0 %v660
        %v845 = vpop.xlane.xlu0 %844
        %846 = vadd.xlane.f32.xlu0 %v661
        %v847 = vpop.xlane.xlu0 %846
        %848 = vadd.xlane.f32.xlu0 %v662
        %v849 = vpop.xlane.xlu0 %848
        %850 = vadd.xlane.f32.xlu0 %v663
        %v851 = vpop.xlane.xlu0 %850
        %852 = vadd.xlane.f32.xlu0 %v664
        %v853 = vpop.xlane.xlu0 %852
        %854 = vadd.xlane.f32.xlu0 %v665
        %v855 = vpop.xlane.xlu0 %854
        %856 = vadd.xlane.f32.xlu0 %v666
        %v857 = vpop.xlane.xlu0 %856
        %858 = vadd.xlane.f32.xlu0 %v667
        %v859 = vpop.xlane.xlu0 %858
        %860 = vadd.xlane.f32.xlu0 %v668
        %v861 = vpop.xlane.xlu0 %860
        %862 = vadd.xlane.f32.xlu0 %v669
        %v863 = vpop.xlane.xlu0 %862
        %864 = vadd.xlane.f32.xlu0 %v670
        %v865 = vpop.xlane.xlu0 %864
        %866 = vadd.xlane.f32.xlu0 %v671
        %v867 = vpop.xlane.xlu0 %866
        %868 = vadd.xlane.f32.xlu0 %v672
        %v869 = vpop.xlane.xlu0 %868
        %870 = vadd.xlane.f32.xlu0 %v673
        %v871 = vpop.xlane.xlu0 %870
        %872 = vadd.xlane.f32.xlu0 %v674
        %v873 = vpop.xlane.xlu0 %872
        %874 = vadd.xlane.f32.xlu0 %v675
        %v875 = vpop.xlane.xlu0 %874
        %876 = vadd.xlane.f32.xlu0 %v676
        %v877 = vpop.xlane.xlu0 %876
        %878 = vadd.xlane.f32.xlu0 %v677
        %v879 = vpop.xlane.xlu0 %878
        %880 = vadd.xlane.f32.xlu0 %v678
        %v881 = vpop.xlane.xlu0 %880
        %882 = vadd.xlane.f32.xlu0 %v679
        %v883 = vpop.xlane.xlu0 %882
        %884 = vadd.xlane.f32.xlu0 %v680
        %v885 = vpop.xlane.xlu0 %884
        %886 = vadd.xlane.f32.xlu0 %v681
        %v887 = vpop.xlane.xlu0 %886
        %888 = vadd.xlane.f32.xlu0 %v682
        %v889 = vpop.xlane.xlu0 %888
        %890 = vadd.xlane.f32.xlu0 %v683
        %v891 = vpop.xlane.xlu0 %890
        %892 = vadd.xlane.f32.xlu0 %v684
        %v893 = vpop.xlane.xlu0 %892
        %894 = vadd.xlane.f32.xlu0 %v685
        %v895 = vpop.xlane.xlu0 %894
        %896 = vadd.xlane.f32.xlu0 %v686
        %v897 = vpop.xlane.xlu0 %896
        %898 = vadd.xlane.f32.xlu0 %v687
        %v899 = vpop.xlane.xlu0 %898
        %900 = vadd.xlane.f32.xlu0 %v688
        %v901 = vpop.xlane.xlu0 %900
        %902 = vadd.xlane.f32.xlu0 %v689
        %v903 = vpop.xlane.xlu0 %902
        %904 = vadd.xlane.f32.xlu0 %v690
        %v905 = vpop.xlane.xlu0 %904
        %906 = vadd.xlane.f32.xlu0 %v691
        %v907 = vpop.xlane.xlu0 %906
        %908 = vadd.xlane.f32.xlu0 %v692
        %v909 = vpop.xlane.xlu0 %908
        %910 = vadd.xlane.f32.xlu0 %v693
        %v911 = vpop.xlane.xlu0 %910
        %912 = vadd.xlane.f32.xlu0 %v694
        %v913 = vpop.xlane.xlu0 %912
        %914 = vadd.xlane.f32.xlu0 %v695
        %v915 = vpop.xlane.xlu0 %914
        %916 = vadd.xlane.f32.xlu0 %v696
        %v917 = vpop.xlane.xlu0 %916
        %918 = vadd.xlane.f32.xlu0 %v697
        %v919 = vpop.xlane.xlu0 %918
        %920 = vadd.xlane.f32.xlu0 %v698
        %v921 = vpop.xlane.xlu0 %920
        %922 = vadd.xlane.f32.xlu0 %v699
        %v923 = vpop.xlane.xlu0 %922
        %924 = vadd.xlane.f32.xlu0 %v700
        %v925 = vpop.xlane.xlu0 %924
        %926 = vadd.xlane.f32.xlu0 %v701
        %v927 = vpop.xlane.xlu0 %926
        %928 = vadd.xlane.f32.xlu0 %v702
        %v929 = vpop.xlane.xlu0 %928
        %930 = vadd.xlane.f32.xlu0 %v703
        %v931 = vpop.xlane.xlu0 %930
        %932 = vadd.xlane.f32.xlu0 %v704
        %v933 = vpop.xlane.xlu0 %932
        %934 = vadd.xlane.f32.xlu0 %v705
        %v935 = vpop.xlane.xlu0 %934
        %936 = vadd.xlane.f32.xlu0 %v706
        %v937 = vpop.xlane.xlu0 %936
        %938 = vadd.xlane.f32.xlu0 %v707
        %v939 = vpop.xlane.xlu0 %938
        %940 = vadd.xlane.f32.xlu0 %v708
        %v941 = vpop.xlane.xlu0 %940
        %942 = vadd.xlane.f32.xlu0 %v709
        %v943 = vpop.xlane.xlu0 %942
        %944 = vadd.xlane.f32.xlu0 %v710
        %v945 = vpop.xlane.xlu0 %944
        %946 = vadd.xlane.f32.xlu0 %v711
        %v947 = vpop.xlane.xlu0 %946
        %948 = vadd.xlane.f32.xlu0 %v712
        %v949 = vpop.xlane.xlu0 %948
        %950 = vadd.xlane.f32.xlu0 %v713
        %v951 = vpop.xlane.xlu0 %950
        %952 = vadd.xlane.f32.xlu0 %v714
        %v953 = vpop.xlane.xlu0 %952
        %954 = vadd.xlane.f32.xlu0 %v715
        %v955 = vpop.xlane.xlu0 %954
        %956 = vadd.xlane.f32.xlu0 %v716
        %v957 = vpop.xlane.xlu0 %956
        %958 = vadd.xlane.f32.xlu0 %v717
        %v959 = vpop.xlane.xlu0 %958
        %960 = vadd.xlane.f32.xlu0 %v718
        %v961 = vpop.xlane.xlu0 %960
        %962 = vadd.xlane.f32.xlu0 %v719
        %v963 = vpop.xlane.xlu0 %962
        %964 = vadd.xlane.f32.xlu0 %v720
        %v965 = vpop.xlane.xlu0 %964
        %966 = vadd.xlane.f32.xlu0 %v721
        %v967 = vpop.xlane.xlu0 %966
        %968 = vadd.xlane.f32.xlu0 %v722
        %v969 = vpop.xlane.xlu0 %968
        %970 = vadd.xlane.f32.xlu0 %v723
        %v971 = vpop.xlane.xlu0 %970
        %972 = vadd.xlane.f32.xlu0 %v724
        %v973 = vpop.xlane.xlu0 %972
        %974 = vadd.xlane.f32.xlu0 %v725
        %v975 = vpop.xlane.xlu0 %974
        %976 = vadd.xlane.f32.xlu0 %v726
        %v977 = vpop.xlane.xlu0 %976
        %978 = vadd.xlane.f32.xlu0 %v727
        %v979 = vpop.xlane.xlu0 %978
        %980 = vadd.xlane.f32.xlu0 %v728
        %v981 = vpop.xlane.xlu0 %980
        %982 = vadd.xlane.f32.xlu0 %v729
        %v983 = vpop.xlane.xlu0 %982
        %984 = vadd.xlane.f32.xlu0 %v730
        %v985 = vpop.xlane.xlu0 %984
        %986 = vadd.xlane.f32.xlu0 %v731
        %v987 = vpop.xlane.xlu0 %986
        %v1116 = vlaneseq
        %v1117 = vshrl.u32 %v1116, 7
        %v1118 = vsub.s32 %v217, %v1117
        %v1119 = vrot.slane %v733, %v1118
        %v1120 = vadd.s32 %v217, 4294967288
        %v1121 = vlaneseq
        %v1122 = vshrl.u32 %v1121, 7
        %v1123 = vsub.s32 %v1120, %v1122
        %v1124 = vrot.slane %v735, %v1123
        %vm1125 = vcmask 130112
        %v1126 = vsel %vm1125, %v1124, %v1119
        %v1127 = vadd.s32 %v217, 4294967280
        %v1128 = vlaneseq
        %v1129 = vshrl.u32 %v1128, 7
        %v1130 = vsub.s32 %v1127, %v1129
        %v1131 = vrot.slane %v737, %v1130
        %vm1132 = vcmask 195712
        %v1133 = vsel %vm1132, %v1131, %v1126
        %v1134 = vadd.s32 %v217, 4294967272
        %v1135 = vlaneseq
        %v1136 = vshrl.u32 %v1135, 7
        %v1137 = vsub.s32 %v1134, %v1136
        %v1138 = vrot.slane %v739, %v1137
        %vm1139 = vcmask 261312
        %v1140 = vsel %vm1139, %v1138, %v1133
        %v1141 = vadd.s32 %v217, 4294967264
        %v1142 = vlaneseq
        %v1143 = vshrl.u32 %v1142, 7
        %v1144 = vsub.s32 %v1141, %v1143
        %v1145 = vrot.slane %v741, %v1144
        %vm1146 = vcmask 326912
        %v1147 = vsel %vm1146, %v1145, %v1140
        %v1148 = vadd.s32 %v217, 4294967256
        %v1149 = vlaneseq
        %v1150 = vshrl.u32 %v1149, 7
        %v1151 = vsub.s32 %v1148, %v1150
        %v1152 = vrot.slane %v743, %v1151
        %vm1153 = vcmask 392512
        %v1154 = vsel %vm1153, %v1152, %v1147
        %v1155 = vadd.s32 %v217, 4294967248
        %v1156 = vlaneseq
        %v1157 = vshrl.u32 %v1156, 7
        %v1158 = vsub.s32 %v1155, %v1157
        %v1159 = vrot.slane %v745, %v1158
        %vm1160 = vcmask 458112
        %v1161 = vsel %vm1160, %v1159, %v1154
        %v1162 = vadd.s32 %v217, 4294967240
        %v1163 = vlaneseq
        %v1164 = vshrl.u32 %v1163, 7
        %v1165 = vsub.s32 %v1162, %v1164
        %v1166 = vrot.slane %v747, %v1165
        %vm1167 = vcmask 523712
        %v1168 = vsel %vm1167, %v1166, %v1161
        %v1169 = vadd.s32 %v217, 4294967232
        %v1170 = vlaneseq
        %v1171 = vshrl.u32 %v1170, 7
        %v1172 = vsub.s32 %v1169, %v1171
        %v1173 = vrot.slane %v749, %v1172
        %vm1174 = vcmask 589312
        %v1175 = vsel %vm1174, %v1173, %v1168
        %v1176 = vadd.s32 %v217, 4294967224
        %v1177 = vlaneseq
        %v1178 = vshrl.u32 %v1177, 7
        %v1179 = vsub.s32 %v1176, %v1178
        %v1180 = vrot.slane %v751, %v1179
        %vm1181 = vcmask 654912
        %v1182 = vsel %vm1181, %v1180, %v1175
        %v1183 = vadd.s32 %v217, 4294967216
        %v1184 = vlaneseq
        %v1185 = vshrl.u32 %v1184, 7
        %v1186 = vsub.s32 %v1183, %v1185
        %v1187 = vrot.slane %v753, %v1186
        %vm1188 = vcmask 720512
        %v1189 = vsel %vm1188, %v1187, %v1182
        %v1190 = vadd.s32 %v217, 4294967208
        %v1191 = vlaneseq
        %v1192 = vshrl.u32 %v1191, 7
        %v1193 = vsub.s32 %v1190, %v1192
        %v1194 = vrot.slane %v755, %v1193
        %vm1195 = vcmask 786112
        %v1196 = vsel %vm1195, %v1194, %v1189
        %v1197 = vadd.s32 %v217, 4294967200
        %v1198 = vlaneseq
        %v1199 = vshrl.u32 %v1198, 7
        %v1200 = vsub.s32 %v1197, %v1199
        %v1201 = vrot.slane %v757, %v1200
        %vm1202 = vcmask 851712
        %v1203 = vsel %vm1202, %v1201, %v1196
        %v1204 = vadd.s32 %v217, 4294967192
        %v1205 = vlaneseq
        %v1206 = vshrl.u32 %v1205, 7
        %v1207 = vsub.s32 %v1204, %v1206
        %v1208 = vrot.slane %v759, %v1207
        %vm1209 = vcmask 917312
        %v1210 = vsel %vm1209, %v1208, %v1203
        %v1211 = vadd.s32 %v217, 4294967184
        %v1212 = vlaneseq
        %v1213 = vshrl.u32 %v1212, 7
        %v1214 = vsub.s32 %v1211, %v1213
        %v1215 = vrot.slane %v761, %v1214
        %vm1216 = vcmask 982912
        %v1217 = vsel %vm1216, %v1215, %v1210
        %v1218 = vadd.s32 %v217, 4294967176
        %v1219 = vlaneseq
        %v1220 = vshrl.u32 %v1219, 7
        %v1221 = vsub.s32 %v1218, %v1220
        %v1222 = vrot.slane %v763, %v1221
        %vm1223 = vcmask 1048512
        %v1224 = vsel %vm1223, %v1222, %v1217
        %v1225 = vlaneseq
        %v1226 = vshrl.u32 %v1225, 7
        %v1227 = vsub.s32 %v217, %v1226
        %v1228 = vrot.slane %v765, %v1227
        %v1229 = vlaneseq
        %v1230 = vshrl.u32 %v1229, 7
        %v1231 = vsub.s32 %v1120, %v1230
        %v1232 = vrot.slane %v767, %v1231
        %v1233 = vsel %vm1125, %v1232, %v1228
        %v1234 = vlaneseq
        %v1235 = vshrl.u32 %v1234, 7
        %v1236 = vsub.s32 %v1127, %v1235
        %v1237 = vrot.slane %v769, %v1236
        %v1238 = vsel %vm1132, %v1237, %v1233
        %v1239 = vlaneseq
        %v1240 = vshrl.u32 %v1239, 7
        %v1241 = vsub.s32 %v1134, %v1240
        %v1242 = vrot.slane %v771, %v1241
        %v1243 = vsel %vm1139, %v1242, %v1238
        %v1244 = vlaneseq
        %v1245 = vshrl.u32 %v1244, 7
        %v1246 = vsub.s32 %v1141, %v1245
        %v1247 = vrot.slane %v773, %v1246
        %v1248 = vsel %vm1146, %v1247, %v1243
        %v1249 = vlaneseq
        %v1250 = vshrl.u32 %v1249, 7
        %v1251 = vsub.s32 %v1148, %v1250
        %v1252 = vrot.slane %v775, %v1251
        %v1253 = vsel %vm1153, %v1252, %v1248
        %v1254 = vlaneseq
        %v1255 = vshrl.u32 %v1254, 7
        %v1256 = vsub.s32 %v1155, %v1255
        %v1257 = vrot.slane %v777, %v1256
        %v1258 = vsel %vm1160, %v1257, %v1253
        %v1259 = vlaneseq
        %v1260 = vshrl.u32 %v1259, 7
        %v1261 = vsub.s32 %v1162, %v1260
        %v1262 = vrot.slane %v779, %v1261
        %v1263 = vsel %vm1167, %v1262, %v1258
        %v1264 = vlaneseq
        %v1265 = vshrl.u32 %v1264, 7
        %v1266 = vsub.s32 %v1169, %v1265
        %v1267 = vrot.slane %v781, %v1266
        %v1268 = vsel %vm1174, %v1267, %v1263
        %v1269 = vlaneseq
        %v1270 = vshrl.u32 %v1269, 7
        %v1271 = vsub.s32 %v1176, %v1270
        %v1272 = vrot.slane %v783, %v1271
        %v1273 = vsel %vm1181, %v1272, %v1268
        %v1274 = vlaneseq
        %v1275 = vshrl.u32 %v1274, 7
        %v1276 = vsub.s32 %v1183, %v1275
        %v1277 = vrot.slane %v785, %v1276
        %v1278 = vsel %vm1188, %v1277, %v1273
        %v1279 = vlaneseq
        %v1280 = vshrl.u32 %v1279, 7
        %v1281 = vsub.s32 %v1190, %v1280
        %v1282 = vrot.slane %v787, %v1281
        %v1283 = vsel %vm1195, %v1282, %v1278
        %v1284 = vlaneseq
        %v1285 = vshrl.u32 %v1284, 7
        %v1286 = vsub.s32 %v1197, %v1285
        %v1287 = vrot.slane %v789, %v1286
        %v1288 = vsel %vm1202, %v1287, %v1283
        %v1289 = vlaneseq
        %v1290 = vshrl.u32 %v1289, 7
        %v1291 = vsub.s32 %v1204, %v1290
        %v1292 = vrot.slane %v791, %v1291
        %v1293 = vsel %vm1209, %v1292, %v1288
        %v1294 = vlaneseq
        %v1295 = vshrl.u32 %v1294, 7
        %v1296 = vsub.s32 %v1211, %v1295
        %v1297 = vrot.slane %v793, %v1296
        %v1298 = vsel %vm1216, %v1297, %v1293
        %v1299 = vlaneseq
        %v1300 = vshrl.u32 %v1299, 7
        %v1301 = vsub.s32 %v1218, %v1300
        %v1302 = vrot.slane %v795, %v1301
        %v1303 = vsel %vm1223, %v1302, %v1298
        %v1304 = vlaneseq
        %v1305 = vshrl.u32 %v1304, 7
        %v1306 = vsub.s32 %v217, %v1305
        %v1307 = vrot.slane %v797, %v1306
        %v1308 = vlaneseq
        %v1309 = vshrl.u32 %v1308, 7
        %v1310 = vsub.s32 %v1120, %v1309
        %v1311 = vrot.slane %v799, %v1310
        %v1312 = vsel %vm1125, %v1311, %v1307
        %v1313 = vlaneseq
        %v1314 = vshrl.u32 %v1313, 7
        %v1315 = vsub.s32 %v1127, %v1314
        %v1316 = vrot.slane %v801, %v1315
        %v1317 = vsel %vm1132, %v1316, %v1312
        %v1318 = vlaneseq
        %v1319 = vshrl.u32 %v1318, 7
        %v1320 = vsub.s32 %v1134, %v1319
        %v1321 = vrot.slane %v803, %v1320
        %v1322 = vsel %vm1139, %v1321, %v1317
        %v1323 = vlaneseq
        %v1324 = vshrl.u32 %v1323, 7
        %v1325 = vsub.s32 %v1141, %v1324
        %v1326 = vrot.slane %v805, %v1325
        %v1327 = vsel %vm1146, %v1326, %v1322
        %v1328 = vlaneseq
        %v1329 = vshrl.u32 %v1328, 7
        %v1330 = vsub.s32 %v1148, %v1329
        %v1331 = vrot.slane %v807, %v1330
        %v1332 = vsel %vm1153, %v1331, %v1327
        %v1333 = vlaneseq
        %v1334 = vshrl.u32 %v1333, 7
        %v1335 = vsub.s32 %v1155, %v1334
        %v1336 = vrot.slane %v809, %v1335
        %v1337 = vsel %vm1160, %v1336, %v1332
        %v1338 = vlaneseq
        %v1339 = vshrl.u32 %v1338, 7
        %v1340 = vsub.s32 %v1162, %v1339
        %v1341 = vrot.slane %v811, %v1340
        %v1342 = vsel %vm1167, %v1341, %v1337
        %v1343 = vlaneseq
        %v1344 = vshrl.u32 %v1343, 7
        %v1345 = vsub.s32 %v1169, %v1344
        %v1346 = vrot.slane %v813, %v1345
        %v1347 = vsel %vm1174, %v1346, %v1342
        %v1348 = vlaneseq
        %v1349 = vshrl.u32 %v1348, 7
        %v1350 = vsub.s32 %v1176, %v1349
        %v1351 = vrot.slane %v815, %v1350
        %v1352 = vsel %vm1181, %v1351, %v1347
        %v1353 = vlaneseq
        %v1354 = vshrl.u32 %v1353, 7
        %v1355 = vsub.s32 %v1183, %v1354
        %v1356 = vrot.slane %v817, %v1355
        %v1357 = vsel %vm1188, %v1356, %v1352
        %v1358 = vlaneseq
        %v1359 = vshrl.u32 %v1358, 7
        %v1360 = vsub.s32 %v1190, %v1359
        %v1361 = vrot.slane %v819, %v1360
        %v1362 = vsel %vm1195, %v1361, %v1357
        %v1363 = vlaneseq
        %v1364 = vshrl.u32 %v1363, 7
        %v1365 = vsub.s32 %v1197, %v1364
        %v1366 = vrot.slane %v821, %v1365
        %v1367 = vsel %vm1202, %v1366, %v1362
        %v1368 = vlaneseq
        %v1369 = vshrl.u32 %v1368, 7
        %v1370 = vsub.s32 %v1204, %v1369
        %v1371 = vrot.slane %v823, %v1370
        %v1372 = vsel %vm1209, %v1371, %v1367
        %v1373 = vlaneseq
        %v1374 = vshrl.u32 %v1373, 7
        %v1375 = vsub.s32 %v1211, %v1374
        %v1376 = vrot.slane %v825, %v1375
        %v1377 = vsel %vm1216, %v1376, %v1372
        %v1378 = vlaneseq
        %v1379 = vshrl.u32 %v1378, 7
        %v1380 = vsub.s32 %v1218, %v1379
        %v1381 = vrot.slane %v827, %v1380
        %v1382 = vsel %vm1223, %v1381, %v1377
        %v1383 = vlaneseq
        %v1384 = vshrl.u32 %v1383, 7
        %v1385 = vsub.s32 %v217, %v1384
        %v1386 = vrot.slane %v829, %v1385
        %v1387 = vlaneseq
        %v1388 = vshrl.u32 %v1387, 7
        %v1389 = vsub.s32 %v1120, %v1388
        %v1390 = vrot.slane %v831, %v1389
        %v1391 = vsel %vm1125, %v1390, %v1386
        %v1392 = vlaneseq
        %v1393 = vshrl.u32 %v1392, 7
        %v1394 = vsub.s32 %v1127, %v1393
        %v1395 = vrot.slane %v833, %v1394
        %v1396 = vsel %vm1132, %v1395, %v1391
        %v1397 = vlaneseq
        %v1398 = vshrl.u32 %v1397, 7
        %v1399 = vsub.s32 %v1134, %v1398
        %v1400 = vrot.slane %v835, %v1399
        %v1401 = vsel %vm1139, %v1400, %v1396
        %v1402 = vlaneseq
        %v1403 = vshrl.u32 %v1402, 7
        %v1404 = vsub.s32 %v1141, %v1403
        %v1405 = vrot.slane %v837, %v1404
        %v1406 = vsel %vm1146, %v1405, %v1401
        %v1407 = vlaneseq
        %v1408 = vshrl.u32 %v1407, 7
        %v1409 = vsub.s32 %v1148, %v1408
        %v1410 = vrot.slane %v839, %v1409
        %v1411 = vsel %vm1153, %v1410, %v1406
        %v1412 = vlaneseq
        %v1413 = vshrl.u32 %v1412, 7
        %v1414 = vsub.s32 %v1155, %v1413
        %v1415 = vrot.slane %v841, %v1414
        %v1416 = vsel %vm1160, %v1415, %v1411
        %v1417 = vlaneseq
        %v1418 = vshrl.u32 %v1417, 7
        %v1419 = vsub.s32 %v1162, %v1418
        %v1420 = vrot.slane %v843, %v1419
        %v1421 = vsel %vm1167, %v1420, %v1416
        %v1422 = vlaneseq
        %v1423 = vshrl.u32 %v1422, 7
        %v1424 = vsub.s32 %v1169, %v1423
        %v1425 = vrot.slane %v845, %v1424
        %v1426 = vsel %vm1174, %v1425, %v1421
        %v1427 = vlaneseq
        %v1428 = vshrl.u32 %v1427, 7
        %v1429 = vsub.s32 %v1176, %v1428
        %v1430 = vrot.slane %v847, %v1429
        %v1431 = vsel %vm1181, %v1430, %v1426
        %v1432 = vlaneseq
        %v1433 = vshrl.u32 %v1432, 7
        %v1434 = vsub.s32 %v1183, %v1433
        %v1435 = vrot.slane %v849, %v1434
        %v1436 = vsel %vm1188, %v1435, %v1431
        %v1437 = vlaneseq
        %v1438 = vshrl.u32 %v1437, 7
        %v1439 = vsub.s32 %v1190, %v1438
        %v1440 = vrot.slane %v851, %v1439
        %v1441 = vsel %vm1195, %v1440, %v1436
        %v1442 = vlaneseq
        %v1443 = vshrl.u32 %v1442, 7
        %v1444 = vsub.s32 %v1197, %v1443
        %v1445 = vrot.slane %v853, %v1444
        %v1446 = vsel %vm1202, %v1445, %v1441
        %v1447 = vlaneseq
        %v1448 = vshrl.u32 %v1447, 7
        %v1449 = vsub.s32 %v1204, %v1448
        %v1450 = vrot.slane %v855, %v1449
        %v1451 = vsel %vm1209, %v1450, %v1446
        %v1452 = vlaneseq
        %v1453 = vshrl.u32 %v1452, 7
        %v1454 = vsub.s32 %v1211, %v1453
        %v1455 = vrot.slane %v857, %v1454
        %v1456 = vsel %vm1216, %v1455, %v1451
        %v1457 = vlaneseq
        %v1458 = vshrl.u32 %v1457, 7
        %v1459 = vsub.s32 %v1218, %v1458
        %v1460 = vrot.slane %v859, %v1459
        %v1461 = vsel %vm1223, %v1460, %v1456
        %v1462 = vlaneseq
        %v1463 = vshrl.u32 %v1462, 7
        %v1464 = vsub.s32 %v217, %v1463
        %v1465 = vrot.slane %v861, %v1464
        %v1466 = vlaneseq
        %v1467 = vshrl.u32 %v1466, 7
        %v1468 = vsub.s32 %v1120, %v1467
        %v1469 = vrot.slane %v863, %v1468
        %v1470 = vsel %vm1125, %v1469, %v1465
        %v1471 = vlaneseq
        %v1472 = vshrl.u32 %v1471, 7
        %v1473 = vsub.s32 %v1127, %v1472
        %v1474 = vrot.slane %v865, %v1473
        %v1475 = vsel %vm1132, %v1474, %v1470
        %v1476 = vlaneseq
        %v1477 = vshrl.u32 %v1476, 7
        %v1478 = vsub.s32 %v1134, %v1477
        %v1479 = vrot.slane %v867, %v1478
        %v1480 = vsel %vm1139, %v1479, %v1475
        %v1481 = vlaneseq
        %v1482 = vshrl.u32 %v1481, 7
        %v1483 = vsub.s32 %v1141, %v1482
        %v1484 = vrot.slane %v869, %v1483
        %v1485 = vsel %vm1146, %v1484, %v1480
        %v1486 = vlaneseq
        %v1487 = vshrl.u32 %v1486, 7
        %v1488 = vsub.s32 %v1148, %v1487
        %v1489 = vrot.slane %v871, %v1488
        %v1490 = vsel %vm1153, %v1489, %v1485
        %v1491 = vlaneseq
        %v1492 = vshrl.u32 %v1491, 7
        %v1493 = vsub.s32 %v1155, %v1492
        %v1494 = vrot.slane %v873, %v1493
        %v1495 = vsel %vm1160, %v1494, %v1490
        %v1496 = vlaneseq
        %v1497 = vshrl.u32 %v1496, 7
        %v1498 = vsub.s32 %v1162, %v1497
        %v1499 = vrot.slane %v875, %v1498
        %v1500 = vsel %vm1167, %v1499, %v1495
        %v1501 = vlaneseq
        %v1502 = vshrl.u32 %v1501, 7
        %v1503 = vsub.s32 %v1169, %v1502
        %v1504 = vrot.slane %v877, %v1503
        %v1505 = vsel %vm1174, %v1504, %v1500
        %v1506 = vlaneseq
        %v1507 = vshrl.u32 %v1506, 7
        %v1508 = vsub.s32 %v1176, %v1507
        %v1509 = vrot.slane %v879, %v1508
        %v1510 = vsel %vm1181, %v1509, %v1505
        %v1511 = vlaneseq
        %v1512 = vshrl.u32 %v1511, 7
        %v1513 = vsub.s32 %v1183, %v1512
        %v1514 = vrot.slane %v881, %v1513
        %v1515 = vsel %vm1188, %v1514, %v1510
        %v1516 = vlaneseq
        %v1517 = vshrl.u32 %v1516, 7
        %v1518 = vsub.s32 %v1190, %v1517
        %v1519 = vrot.slane %v883, %v1518
        %v1520 = vsel %vm1195, %v1519, %v1515
        %v1521 = vlaneseq
        %v1522 = vshrl.u32 %v1521, 7
        %v1523 = vsub.s32 %v1197, %v1522
        %v1524 = vrot.slane %v885, %v1523
        %v1525 = vsel %vm1202, %v1524, %v1520
        %v1526 = vlaneseq
        %v1527 = vshrl.u32 %v1526, 7
        %v1528 = vsub.s32 %v1204, %v1527
        %v1529 = vrot.slane %v887, %v1528
        %v1530 = vsel %vm1209, %v1529, %v1525
        %v1531 = vlaneseq
        %v1532 = vshrl.u32 %v1531, 7
        %v1533 = vsub.s32 %v1211, %v1532
        %v1534 = vrot.slane %v889, %v1533
        %v1535 = vsel %vm1216, %v1534, %v1530
        %v1536 = vlaneseq
        %v1537 = vshrl.u32 %v1536, 7
        %v1538 = vsub.s32 %v1218, %v1537
        %v1539 = vrot.slane %v891, %v1538
        %v1540 = vsel %vm1223, %v1539, %v1535
        %v1541 = vlaneseq
        %v1542 = vshrl.u32 %v1541, 7
        %v1543 = vsub.s32 %v217, %v1542
        %v1544 = vrot.slane %v893, %v1543
        %v1545 = vlaneseq
        %v1546 = vshrl.u32 %v1545, 7
        %v1547 = vsub.s32 %v1120, %v1546
        %v1548 = vrot.slane %v895, %v1547
        %v1549 = vsel %vm1125, %v1548, %v1544
        %v1550 = vlaneseq
        %v1551 = vshrl.u32 %v1550, 7
        %v1552 = vsub.s32 %v1127, %v1551
        %v1553 = vrot.slane %v897, %v1552
        %v1554 = vsel %vm1132, %v1553, %v1549
        %v1555 = vlaneseq
        %v1556 = vshrl.u32 %v1555, 7
        %v1557 = vsub.s32 %v1134, %v1556
        %v1558 = vrot.slane %v899, %v1557
        %v1559 = vsel %vm1139, %v1558, %v1554
        %v1560 = vlaneseq
        %v1561 = vshrl.u32 %v1560, 7
        %v1562 = vsub.s32 %v1141, %v1561
        %v1563 = vrot.slane %v901, %v1562
        %v1564 = vsel %vm1146, %v1563, %v1559
        %v1565 = vlaneseq
        %v1566 = vshrl.u32 %v1565, 7
        %v1567 = vsub.s32 %v1148, %v1566
        %v1568 = vrot.slane %v903, %v1567
        %v1569 = vsel %vm1153, %v1568, %v1564
        %v1570 = vlaneseq
        %v1571 = vshrl.u32 %v1570, 7
        %v1572 = vsub.s32 %v1155, %v1571
        %v1573 = vrot.slane %v905, %v1572
        %v1574 = vsel %vm1160, %v1573, %v1569
        %v1575 = vlaneseq
        %v1576 = vshrl.u32 %v1575, 7
        %v1577 = vsub.s32 %v1162, %v1576
        %v1578 = vrot.slane %v907, %v1577
        %v1579 = vsel %vm1167, %v1578, %v1574
        %v1580 = vlaneseq
        %v1581 = vshrl.u32 %v1580, 7
        %v1582 = vsub.s32 %v1169, %v1581
        %v1583 = vrot.slane %v909, %v1582
        %v1584 = vsel %vm1174, %v1583, %v1579
        %v1585 = vlaneseq
        %v1586 = vshrl.u32 %v1585, 7
        %v1587 = vsub.s32 %v1176, %v1586
        %v1588 = vrot.slane %v911, %v1587
        %v1589 = vsel %vm1181, %v1588, %v1584
        %v1590 = vlaneseq
        %v1591 = vshrl.u32 %v1590, 7
        %v1592 = vsub.s32 %v1183, %v1591
        %v1593 = vrot.slane %v913, %v1592
        %v1594 = vsel %vm1188, %v1593, %v1589
        %v1595 = vlaneseq
        %v1596 = vshrl.u32 %v1595, 7
        %v1597 = vsub.s32 %v1190, %v1596
        %v1598 = vrot.slane %v915, %v1597
        %v1599 = vsel %vm1195, %v1598, %v1594
        %v1600 = vlaneseq
        %v1601 = vshrl.u32 %v1600, 7
        %v1602 = vsub.s32 %v1197, %v1601
        %v1603 = vrot.slane %v917, %v1602
        %v1604 = vsel %vm1202, %v1603, %v1599
        %v1605 = vlaneseq
        %v1606 = vshrl.u32 %v1605, 7
        %v1607 = vsub.s32 %v1204, %v1606
        %v1608 = vrot.slane %v919, %v1607
        %v1609 = vsel %vm1209, %v1608, %v1604
        %v1610 = vlaneseq
        %v1611 = vshrl.u32 %v1610, 7
        %v1612 = vsub.s32 %v1211, %v1611
        %v1613 = vrot.slane %v921, %v1612
        %v1614 = vsel %vm1216, %v1613, %v1609
        %v1615 = vlaneseq
        %v1616 = vshrl.u32 %v1615, 7
        %v1617 = vsub.s32 %v1218, %v1616
        %v1618 = vrot.slane %v923, %v1617
        %v1619 = vsel %vm1223, %v1618, %v1614
        %v1620 = vlaneseq
        %v1621 = vshrl.u32 %v1620, 7
        %v1622 = vsub.s32 %v217, %v1621
        %v1623 = vrot.slane %v925, %v1622
        %v1624 = vlaneseq
        %v1625 = vshrl.u32 %v1624, 7
        %v1626 = vsub.s32 %v1120, %v1625
        %v1627 = vrot.slane %v927, %v1626
        %v1628 = vsel %vm1125, %v1627, %v1623
        %v1629 = vlaneseq
        %v1630 = vshrl.u32 %v1629, 7
        %v1631 = vsub.s32 %v1127, %v1630
        %v1632 = vrot.slane %v929, %v1631
        %v1633 = vsel %vm1132, %v1632, %v1628
        %v1634 = vlaneseq
        %v1635 = vshrl.u32 %v1634, 7
        %v1636 = vsub.s32 %v1134, %v1635
        %v1637 = vrot.slane %v931, %v1636
        %v1638 = vsel %vm1139, %v1637, %v1633
        %v1639 = vlaneseq
        %v1640 = vshrl.u32 %v1639, 7
        %v1641 = vsub.s32 %v1141, %v1640
        %v1642 = vrot.slane %v933, %v1641
        %v1643 = vsel %vm1146, %v1642, %v1638
        %v1644 = vlaneseq
        %v1645 = vshrl.u32 %v1644, 7
        %v1646 = vsub.s32 %v1148, %v1645
        %v1647 = vrot.slane %v935, %v1646
        %v1648 = vsel %vm1153, %v1647, %v1643
        %v1649 = vlaneseq
        %v1650 = vshrl.u32 %v1649, 7
        %v1651 = vsub.s32 %v1155, %v1650
        %v1652 = vrot.slane %v937, %v1651
        %v1653 = vsel %vm1160, %v1652, %v1648
        %v1654 = vlaneseq
        %v1655 = vshrl.u32 %v1654, 7
        %v1656 = vsub.s32 %v1162, %v1655
        %v1657 = vrot.slane %v939, %v1656
        %v1658 = vsel %vm1167, %v1657, %v1653
        %v1659 = vlaneseq
        %v1660 = vshrl.u32 %v1659, 7
        %v1661 = vsub.s32 %v1169, %v1660
        %v1662 = vrot.slane %v941, %v1661
        %v1663 = vsel %vm1174, %v1662, %v1658
        %v1664 = vlaneseq
        %v1665 = vshrl.u32 %v1664, 7
        %v1666 = vsub.s32 %v1176, %v1665
        %v1667 = vrot.slane %v943, %v1666
        %v1668 = vsel %vm1181, %v1667, %v1663
        %v1669 = vlaneseq
        %v1670 = vshrl.u32 %v1669, 7
        %v1671 = vsub.s32 %v1183, %v1670
        %v1672 = vrot.slane %v945, %v1671
        %v1673 = vsel %vm1188, %v1672, %v1668
        %v1674 = vlaneseq
        %v1675 = vshrl.u32 %v1674, 7
        %v1676 = vsub.s32 %v1190, %v1675
        %v1677 = vrot.slane %v947, %v1676
        %v1678 = vsel %vm1195, %v1677, %v1673
        %v1679 = vlaneseq
        %v1680 = vshrl.u32 %v1679, 7
        %v1681 = vsub.s32 %v1197, %v1680
        %v1682 = vrot.slane %v949, %v1681
        %v1683 = vsel %vm1202, %v1682, %v1678
        %v1684 = vlaneseq
        %v1685 = vshrl.u32 %v1684, 7
        %v1686 = vsub.s32 %v1204, %v1685
        %v1687 = vrot.slane %v951, %v1686
        %v1688 = vsel %vm1209, %v1687, %v1683
        %v1689 = vlaneseq
        %v1690 = vshrl.u32 %v1689, 7
        %v1691 = vsub.s32 %v1211, %v1690
        %v1692 = vrot.slane %v953, %v1691
        %v1693 = vsel %vm1216, %v1692, %v1688
        %v1694 = vlaneseq
        %v1695 = vshrl.u32 %v1694, 7
        %v1696 = vsub.s32 %v1218, %v1695
        %v1697 = vrot.slane %v955, %v1696
        %v1698 = vsel %vm1223, %v1697, %v1693
        %v1699 = vlaneseq
        %v1700 = vshrl.u32 %v1699, 7
        %v1701 = vsub.s32 %v217, %v1700
        %v1702 = vrot.slane %v957, %v1701
        %v1703 = vlaneseq
        %v1704 = vshrl.u32 %v1703, 7
        %v1705 = vsub.s32 %v1120, %v1704
        %v1706 = vrot.slane %v959, %v1705
        %v1707 = vsel %vm1125, %v1706, %v1702
        %v1708 = vlaneseq
        %v1709 = vshrl.u32 %v1708, 7
        %v1710 = vsub.s32 %v1127, %v1709
        %v1711 = vrot.slane %v961, %v1710
        %v1712 = vsel %vm1132, %v1711, %v1707
        %v1713 = vlaneseq
        %v1714 = vshrl.u32 %v1713, 7
        %v1715 = vsub.s32 %v1134, %v1714
        %v1716 = vrot.slane %v963, %v1715
        %v1717 = vsel %vm1139, %v1716, %v1712
        %v1718 = vlaneseq
        %v1719 = vshrl.u32 %v1718, 7
        %v1720 = vsub.s32 %v1141, %v1719
        %v1721 = vrot.slane %v965, %v1720
        %v1722 = vsel %vm1146, %v1721, %v1717
        %v1723 = vlaneseq
        %v1724 = vshrl.u32 %v1723, 7
        %v1725 = vsub.s32 %v1148, %v1724
        %v1726 = vrot.slane %v967, %v1725
        %v1727 = vsel %vm1153, %v1726, %v1722
        %v1728 = vlaneseq
        %v1729 = vshrl.u32 %v1728, 7
        %v1730 = vsub.s32 %v1155, %v1729
        %v1731 = vrot.slane %v969, %v1730
        %v1732 = vsel %vm1160, %v1731, %v1727
        %v1733 = vlaneseq
        %v1734 = vshrl.u32 %v1733, 7
        %v1735 = vsub.s32 %v1162, %v1734
        %v1736 = vrot.slane %v971, %v1735
        %v1737 = vsel %vm1167, %v1736, %v1732
        %v1738 = vlaneseq
        %v1739 = vshrl.u32 %v1738, 7
        %v1740 = vsub.s32 %v1169, %v1739
        %v1741 = vrot.slane %v973, %v1740
        %v1742 = vsel %vm1174, %v1741, %v1737
        %v1743 = vlaneseq
        %v1744 = vshrl.u32 %v1743, 7
        %v1745 = vsub.s32 %v1176, %v1744
        %v1746 = vrot.slane %v975, %v1745
        %v1747 = vsel %vm1181, %v1746, %v1742
        %v1748 = vlaneseq
        %v1749 = vshrl.u32 %v1748, 7
        %v1750 = vsub.s32 %v1183, %v1749
        %v1751 = vrot.slane %v977, %v1750
        %v1752 = vsel %vm1188, %v1751, %v1747
        %v1753 = vlaneseq
        %v1754 = vshrl.u32 %v1753, 7
        %v1755 = vsub.s32 %v1190, %v1754
        %v1756 = vrot.slane %v979, %v1755
        %v1757 = vsel %vm1195, %v1756, %v1752
        %v1758 = vlaneseq
        %v1759 = vshrl.u32 %v1758, 7
        %v1760 = vsub.s32 %v1197, %v1759
        %v1761 = vrot.slane %v981, %v1760
        %v1762 = vsel %vm1202, %v1761, %v1757
        %v1763 = vlaneseq
        %v1764 = vshrl.u32 %v1763, 7
        %v1765 = vsub.s32 %v1204, %v1764
        %v1766 = vrot.slane %v983, %v1765
        %v1767 = vsel %vm1209, %v1766, %v1762
        %v1768 = vlaneseq
        %v1769 = vshrl.u32 %v1768, 7
        %v1770 = vsub.s32 %v1211, %v1769
        %v1771 = vrot.slane %v985, %v1770
        %v1772 = vsel %vm1216, %v1771, %v1767
        %v1773 = vlaneseq
        %v1774 = vshrl.u32 %v1773, 7
        %v1775 = vsub.s32 %v1218, %v1774
        %v1776 = vrot.slane %v987, %v1775
        %v1777 = vsel %vm1223, %v1776, %v1772
        %vm1778 = vcmask 1041409
        %v1779 = vsel %vm1778, %v1303, %v1224
        %vm1780 = vcmask 1042434
        %v1781 = vsel %vm1780, %v1382, %v1779
        %vm1782 = vcmask 1043459
        %v1783 = vsel %vm1782, %v1461, %v1781
        %vm1784 = vcmask 1044484
        %v1785 = vsel %vm1784, %v1540, %v1783
        %vm1786 = vcmask 1045509
        %v1787 = vsel %vm1786, %v1619, %v1785
        %vm1788 = vcmask 1046534
        %v1789 = vsel %vm1788, %v1698, %v1787
        %vm1790 = vcmask 1047559
        %v1791 = vsel %vm1790, %v1777, %v1789
        %v1793 = vsel %vm219, %v1791, -1e+30
        %1794 = vmax.xlane.f32.xlu0 %v1793
        %v1795 = vpop.xlane.xlu0 %1794
        %v1796 = vsub.f32 %v1793, %v1795
        %v1797 = vmul.f32 %v1796, 1.442695
        %v1798 = vpow.pop %v1797
        %v1799 = vsel %vm219, %v1798, 0.0
        %1800 = vadd.xlane.f32.xlu0 %v1799
        %v1801 = vpop.xlane.xlu0 %1800
        %vm1802 = vcmp.gt.f32.partialorder %v1801, 0.0
        %v1803 = vsel %vm1802, %v1801, 1.0
        %v1804 = vrcp.pop %v1803
        %v1805 = vmul.f32 %v1803, %v1804
        %v1806 = vsub.f32 2.0, %v1805
        %v1807 = vmul.f32 %v1804, %v1806
        %v1808 = vlaneseq
        %v1809 = vshrl.u32 %v1808, 7
        %v1810 = vstv %s249
        %v1811 = vadd.s32 %v1810, %v1809
        %vm1812 = vcmp.lt.s32.totalorder %v1811, %v218
        %vm1813 = vmand %vm1812, %vm219
        %v1814 = vmul.f32 %v1799, %v1807
        %v1815 = vsel %vm1813, %v1814, 0.0
        %s1816 = scalar_lea.vmem %s197, %s249
        %1817 = vst [vmem:[%s1816] sm:$0xff] %v1815
      $region37: #{similarity_adjacency.3} parent=31 // loop_footer
        %s246 = sadd.s32 %s244, 1
      $region38: #{similarity_adjacency.3} parent=31 // loop_footer_branch
        %243 = sbr.rel target = $region34
      $region39: #{similarity_adjacency.3} parent=31 // loop_exit
        _
      %p1818 = scmp.lt.s32.totalorder %s21, 1
      %s1819 = scalar_select %p1818, %s21, 1
      %s1820 = smul.addr %s1819, 16
      %s1821 = smul.addr %s1820, 8
      %s1822 = scalar_lea.vmem %s4, %s1821
      // Predicated region
      $region40: #{similarity_adjacency.3} parent=31 // pred_check
        %p1823 = pneg %p112
      $region41: #{similarity_adjacency.3} parent=31 // pred_check_branch
        %1825 = sbr.rel (%p1823) target = $region43
      $region42: #{similarity_adjacency.3} parent=31 // pred_region
        _
      $region43: #{similarity_adjacency.3} parent=31 // pred_fallthru
        _
    $region32: #{similarity_adjacency.3} parent=5 // pred_fallthru
      _
    %p1826 = scmp.le.s32.totalorder 2, %s16
    // Predicated region
    $region44: #{similarity_adjacency.3} parent=5 // pred_check
      %p1827 = pneg %p1826
    $region45: #{similarity_adjacency.3} parent=5 // pred_check_branch
      %1829 = sbr.rel (%p1827) target = $region47
    $region46: #{similarity_adjacency.3} parent=5 // pred_region
      %s1830 = ssub.s32 %s16, 2
      // Predicated region
      $region48: #{similarity_adjacency.3} parent=46 // pred_check
        %p1831 = pneg %p118
      $region49: #{similarity_adjacency.3} parent=46 // pred_check_branch
        %1833 = sbr.rel (%p1831) target = $region51
      $region50: #{similarity_adjacency.3} parent=46 // pred_region
        %p1834 = scmp.lt.s32.totalorder %s22, 1
        %s1835 = scalar_select %p1834, %s22, 1
        %s1836 = smul.addr %s1835, 16
        %s1837 = smul.addr %s1836, 8
        %s1838 = scalar_lea.vmem %s4, %s1837
      $region51: #{similarity_adjacency.3} parent=46 // pred_fallthru
        _
    $region47: #{similarity_adjacency.3} parent=5 // pred_fallthru
      _
  $region6: #{similarity_adjacency.3} parent=0 // loop_footer
    %s20 = sadd.s32 1, %s16
  $region7: #{similarity_adjacency.3} parent=0 // loop_footer_branch
    %15 = sbr.rel target = $region3
  $region8: #{similarity_adjacency.3} parent=0 // loop_exit
    _

</llo_original>
